<compile_context>
chip_gen: v6e
topology: v6e:2x2x1
jax: 0.10.0
libtpu: 0.0.40
codegen_flags: <defaults>
</compile_context>

<pallas_src>
import functools

import jax
import jax.numpy as jnp
from jax.experimental import pallas as pl
from jax.experimental.pallas import tpu as pltpu


LANE = 128     # feature axis padded to the 128-lane dimension
TILE = 512     # streamed A_hat tile (rows == reduction), square so n_pad pads once


def _round_up(x, m):
    return (x + m - 1) // m * m


def _device_budgets():
    """(vmem_limit_bytes, fused_max_nodes) derived from physical VMEM size."""
    try:
        cap = pltpu.get_tpu_info().vmem_capacity_bytes
    except Exception:
        cap = 128 * 1024 * 1024
    if cap <= 64 * 1024 * 1024:
        # v7x: 64 MiB per TC.  Leave headroom for compiler scratch, and route
        # mid-size graphs to the streaming path so its "parallel" row axis is
        # sharded across both TensorCores (the fused path runs on one TC).
        return 48 * 1024 * 1024, 1024
    # v5e / v6e: 128 MiB physical VMEM (scoped default is much lower -> raise it).
    return 96 * 1024 * 1024, 4096


# ---------------------------------------------------------------------------
# Fused small-N kernel: the whole layer stack in one pallas_call.
# A_hat and X are loaded into VMEM once (constant index_map, single-buffered);
# Z chains between layers through a bf16 VMEM scratch, never touching HBM.
# ---------------------------------------------------------------------------
def _fused_gconv_kernel(a_ref, x_ref, w_ref, b_ref, alpha_ref, o_ref, z_ref):
    layer = pl.program_id(0)

    @pl.when(layer == 0)
    def _():
        z_ref[...] = x_ref[...]

    # aggregate: A_hat @ Z   (bf16 operands, f32 accumulation on the MXU)
    agg = jnp.dot(a_ref[...], z_ref[...], preferred_element_type=jnp.float32)
    # linear + bias: (A_hat @ Z) @ W + b
    h = jnp.dot(agg.astype(jnp.bfloat16), w_ref[0],
                preferred_element_type=jnp.float32) + b_ref[0]
    # per-channel PReLU
    z = jnp.where(h > 0, h, alpha_ref[0] * h)
    z_ref[...] = z.astype(z_ref.dtype)     # stays in VMEM for the next layer

    @pl.when(layer == pl.num_programs(0) - 1)
    def _():
        o_ref[...] = z.astype(o_ref.dtype)


def _build_fused_call(n_pad, f_pad, num_layers, vmem_limit, single_buffer_consts):
    # Constant-index inputs are fetched once; the second pipeline buffer is dead
    # weight, so single-buffer them (saves n_pad^2 * 2 bytes of VMEM for A_hat).
    const_kw = {"pipeline_mode": pl.Buffered(1)} if single_buffer_consts else {}
    return pl.pallas_call(
        _fused_gconv_kernel,
        out_shape=jax.ShapeDtypeStruct((n_pad, f_pad), jnp.float32),
        grid_spec=pltpu.PrefetchScalarGridSpec(
            num_scalar_prefetch=0,
            grid=(num_layers,),
            in_specs=[
                pl.BlockSpec((n_pad, n_pad), lambda l: (0, 0), **const_kw),   # A_hat
                pl.BlockSpec((n_pad, f_pad), lambda l: (0, 0), **const_kw),   # X
                pl.BlockSpec((1, f_pad, f_pad), lambda l: (l, 0, 0)),         # W_l
                pl.BlockSpec((1, 1, f_pad), lambda l: (l, 0, 0)),             # b_l
                pl.BlockSpec((1, 1, f_pad), lambda l: (l, 0, 0)),             # alpha_l
            ],
            out_specs=pl.BlockSpec((n_pad, f_pad), lambda l: (0, 0)),
            scratch_shapes=[pltpu.VMEM((n_pad, f_pad), jnp.bfloat16)],
        ),
        compiler_params=pltpu.CompilerParams(
            dimension_semantics=("arbitrary",),
            vmem_limit_bytes=vmem_limit,
        ),
    )


def _gconv_fused(a_hat_p, x_p, w_all, b_all, alpha_all, vmem_limit):
    num_layers = w_all.shape[0]
    n_pad = a_hat_p.shape[0]
    f_pad = x_p.shape[1]
    args = (a_hat_p, x_p, w_all, b_all, alpha_all)
    try:
        return _build_fused_call(n_pad, f_pad, num_layers, vmem_limit, True)(*args)
    except Exception:
        # pipeline_mode=Buffered(1) not supported here -> plain double buffering.
        return _build_fused_call(n_pad, f_pad, num_layers, vmem_limit, False)(*args)


# ---------------------------------------------------------------------------
# Large-N streaming kernel: one GCN layer, row-tiled grid.
#   grid = (row tiles [parallel], reduction over nodes [arbitrary])
#   acc[TILE, f_pad] (f32) accumulates A_hat[rows, k] @ Z[k, :]; epilogue applies
#   W, bias and PReLU once per row tile.  Z is VMEM-resident when it fits.
# ---------------------------------------------------------------------------
def _gcn_layer_kernel(a_ref, z_ref, w_ref, b_ref, alpha_ref, o_ref, acc_ref,
                      *, z_resident, tile_k):
    k = pl.program_id(1)

    @pl.when(k == 0)
    def _():
        acc_ref[...] = jnp.zeros_like(acc_ref)

    if z_resident:
        start = pl.multiple_of(k * tile_k, tile_k)
        z_blk = z_ref[pl.ds(start, tile_k), :]
    else:
        z_blk = z_ref[...]

    # A_hat tile is bf16 (the dominant O(N^2) HBM traffic); Z is carried in f32
    # between layers (negligible O(N*F) traffic, avoids one bf16 round-off per
    # layer), so the aggregation runs as an f32 MXU matmul.  The streamed path
    # is HBM-bound on A_hat, so the extra MXU passes are largely hidden.
    acc_ref[...] += jnp.dot(a_ref[...].astype(jnp.float32), z_blk,
                            preferred_element_type=jnp.float32)

    @pl.when(k == pl.num_programs(1) - 1)
    def _():
        h = jnp.dot(acc_ref[...].astype(jnp.bfloat16), w_ref[...],
                    preferred_element_type=jnp.float32) + b_ref[...]
        o_ref[...] = jnp.where(h > 0, h, alpha_ref[...] * h).astype(o_ref.dtype)


def _build_layer_call(n_pad, f_pad, vmem_limit, z_resident, single_buffer_consts):
    const_kw = {"pipeline_mode": pl.Buffered(1)} if single_buffer_consts else {}
    if z_resident:
        # Whole Z resident in VMEM for the layer -> A_hat is the only streamed input.
        z_spec = pl.BlockSpec((n_pad, f_pad), lambda i, k: (0, 0), **const_kw)
    else:
        z_spec = pl.BlockSpec((TILE, f_pad), lambda i, k: (k, 0))
    kernel = functools.partial(_gcn_layer_kernel, z_resident=z_resident, tile_k=TILE)
    grid = (n_pad // TILE, n_pad // TILE)
    return pl.pallas_call(
        kernel,
        out_shape=jax.ShapeDtypeStruct((n_pad, f_pad), jnp.float32),
        grid_spec=pltpu.PrefetchScalarGridSpec(
            num_scalar_prefetch=0,
            grid=grid,
            in_specs=[
                pl.BlockSpec((TILE, TILE), lambda i, k: (i, k)),               # A_hat
                z_spec,                                                        # Z
                pl.BlockSpec((f_pad, f_pad), lambda i, k: (0, 0), **const_kw), # W
                pl.BlockSpec((1, f_pad), lambda i, k: (0, 0), **const_kw),     # b
                pl.BlockSpec((1, f_pad), lambda i, k: (0, 0), **const_kw),     # alpha
            ],
            out_specs=pl.BlockSpec((TILE, f_pad), lambda i, k: (i, 0)),
            scratch_shapes=[pltpu.VMEM((TILE, f_pad), jnp.float32)],
        ),
        compiler_params=pltpu.CompilerParams(
            dimension_semantics=("parallel", "arbitrary"),
            vmem_limit_bytes=vmem_limit,
        ),
    )


def _gcn_layer_streamed(a_hat_p, z_p, w_p, b_p, alpha_p, vmem_limit):
    n_pad = a_hat_p.shape[0]
    f_pad = w_p.shape[1]
    # Keep Z fully VMEM-resident per layer when it fits comfortably
    # (~16 MiB on v7x, ~32 MiB on v5e/v6e); otherwise stream it tiled.
    z_resident = (n_pad * f_pad * 4) <= (vmem_limit // 3)
    args = (a_hat_p, z_p, w_p, b_p, alpha_p)
    try:
        return _build_layer_call(n_pad, f_pad, vmem_limit, z_resident, True)(*args)
    except Exception:
        return _build_layer_call(n_pad, f_pad, vmem_limit, z_resident, False)(*args)


# ---------------------------------------------------------------------------
# JAX glue: GCN-normalized dense adjacency (matches PyG gcn_norm), zero-padded.
# Values are scattered directly at the target dtype (no transient f32 N^2 array).
# ---------------------------------------------------------------------------
def gcn_norm_dense(edge_index, num_nodes, n_pad, edge_weight=None,
                   dtype=jnp.float32):
    src, dst = edge_index[0], edge_index[1]
    if edge_weight is None:
        edge_weight = jnp.ones(src.shape[0], dtype=jnp.float32)
    loop = jnp.arange(num_nodes, dtype=src.dtype)
    src = jnp.concatenate([src, loop])
    dst = jnp.concatenate([dst, loop])
    ew = jnp.concatenate([edge_weight.astype(jnp.float32),
                          jnp.ones(num_nodes, dtype=jnp.float32)])
    deg = jnp.zeros((num_nodes,), jnp.float32).at[dst].add(ew)
    dinv = jnp.where(deg > 0, 1.0 / jnp.sqrt(deg), 0.0)
    norm = (dinv[src] * ew * dinv[dst]).astype(dtype)
    return jnp.zeros((n_pad, n_pad), dtype).at[dst, src].add(norm)


# ---------------------------------------------------------------------------
# GConv module: num_layers x (GCNConv -> PReLU(hidden_dim))
# ---------------------------------------------------------------------------
def init_gconv_params(key, input_dim, hidden_dim, num_layers):
    params = []
    for i in range(num_layers):
        f_in = input_dim if i == 0 else hidden_dim
        key, kw = jax.random.split(key)
        scale = jnp.sqrt(6.0 / (f_in + hidden_dim))
        w = jax.random.uniform(kw, (f_in, hidden_dim), jnp.float32, -scale, scale)
        b = jnp.zeros((hidden_dim,), jnp.float32)
        alpha = jnp.full((hidden_dim,), 0.25, jnp.float32)  # PyTorch PReLU default
        params.append((w, b, alpha))
    return params


def gconv_forward(params, x, edge_index, edge_weight=None, force_streaming=False):
    num_nodes, input_dim = x.shape
    hidden_dim = params[0][0].shape[1]
    num_layers = len(params)
    f_pad = _round_up(max(input_dim, hidden_dim), LANE)

    vmem_limit, fused_max_nodes = _device_budgets()
    fused = (num_nodes <= fused_max_nodes) and not force_streaming
    n_pad = _round_up(num_nodes, LANE if fused else TILE)

    # TODO(synk): for realistic sparse graphs, replace the dense A_hat with a
    # block-sparse formulation (PrefetchScalarGridSpec over nonzero column blocks)
    # instead of densifying the full N^2 adjacency.
    a_hat_p = gcn_norm_dense(edge_index, num_nodes, n_pad, edge_weight,
                             dtype=jnp.bfloat16)

    x_p = jnp.zeros((n_pad, f_pad), jnp.float32)
    x_p = x_p.at[:num_nodes, :input_dim].set(x.astype(jnp.float32))

    ws, bs, als = [], [], []
    for (w, b, alpha) in params:
        f_in = w.shape[0]
        ws.append(jnp.zeros((f_pad, f_pad), jnp.float32)
                  .at[:f_in, :hidden_dim].set(w.astype(jnp.float32)))
        bs.append(jnp.zeros((f_pad,), jnp.float32).at[:hidden_dim].set(b))
        als.append(jnp.zeros((f_pad,), jnp.float32).at[:hidden_dim].set(alpha))

    if fused:
        w_all = jnp.stack(ws).astype(jnp.bfloat16)       # [L, f_pad, f_pad]
        b_all = jnp.stack(bs)[:, None, :]                # [L, 1, f_pad]  f32
        al_all = jnp.stack(als)[:, None, :]              # [L, 1, f_pad]  f32
        out = _gconv_fused(a_hat_p, x_p.astype(jnp.bfloat16),
                           w_all, b_all, al_all, vmem_limit)
    else:
        z = x_p                                          # f32 intermediate Z
        for li in range(num_layers):
            z = _gcn_layer_streamed(a_hat_p, z, ws[li].astype(jnp.bfloat16),
                                    bs[li][None, :], als[li][None, :], vmem_limit)
        out = z

    return out[:num_nodes, :hidden_dim]


def gconv_reference(params, x, edge_index, edge_weight=None):
    """Pure-JAX f32 reference for a sanity check."""
    num_nodes = x.shape[0]
    a_hat = gcn_norm_dense(edge_index, num_nodes, num_nodes, edge_weight)
    z = x.astype(jnp.float32)
    for (w, b, alpha) in params:
        h = a_hat @ (z @ w) + b
        z = jnp.where(h > 0, h, alpha * h)
    return z


if __name__ == "__main__":
    key = jax.random.PRNGKey(0)

    num_nodes = 16
    input_dim = 8
    hidden_dim = 32
    num_layers = 2

    key, kx = jax.random.split(key)
    x = jax.random.normal(kx, (num_nodes, input_dim), jnp.float32)

    # small undirected graph: ring plus a few chords (edges listed both ways)
    src = jnp.arange(num_nodes, dtype=jnp.int32)
    dst = (src + 1) % num_nodes
    chord_src = jnp.array([0, 3, 5, 9], dtype=jnp.int32)
    chord_dst = jnp.array([8, 12, 10, 14], dtype=jnp.int32)
    e_src = jnp.concatenate([src, dst, chord_src, chord_dst])
    e_dst = jnp.concatenate([dst, src, chord_dst, chord_src])
    edge_index = jnp.stack([e_src, e_dst], axis=0)   # [2, 40]

    params = init_gconv_params(key, input_dim, hidden_dim, num_layers)
    ref = gconv_reference(params, x, edge_index)

    def check(out, name):
        out = jax.block_until_ready(out)
        assert out.shape == (num_nodes, hidden_dim), name
        assert jnp.all(jnp.isfinite(out)), name
        rel = jnp.max(jnp.abs(out - ref)) / (jnp.max(jnp.abs(ref)) + 1e-6)
        assert rel < 0.1, f"{name}: relative error too large: {rel}"

    # 1) fused (A_hat VMEM-resident) path — the one the demo size selects
    check(gconv_forward(params, x, edge_index), "fused")
    # 2) streamed per-layer path, forced so it is exercised at demo size too
    check(gconv_forward(params, x, edge_index, force_streaming=True), "streamed")

    # 3) slightly larger ring graph so the streamed kernel runs a real
    #    (row-tiles x reduction-tiles) grid with accumulator init/finalize
    n2 = 640
    key, kx2 = jax.random.split(key)
    x2 = jax.random.normal(kx2, (n2, input_dim), jnp.float32)
    s2 = jnp.arange(n2, dtype=jnp.int32)
    d2 = (s2 + 1) % n2
    ei2 = jnp.stack([jnp.concatenate([s2, d2]), jnp.concatenate([d2, s2])], axis=0)
    ref2 = gconv_reference(params, x2, ei2)
    out2 = jax.block_until_ready(
        gconv_forward(params, x2, ei2, force_streaming=True))
    assert out2.shape == (n2, hidden_dim)
    rel2 = jnp.max(jnp.abs(out2 - ref2)) / (jnp.max(jnp.abs(ref2)) + 1e-6)
    assert jnp.all(jnp.isfinite(out2)) and rel2 < 0.1, f"streamed-640: {rel2}"

    print("KERNEL_OK")
</pallas_src>

<mosaic_0001>
module attributes {stable_mosaic.version = 11 : i64} {
  func.func @_fused_gconv_kernel(%arg0: i32, %arg1: memref<128x128xbf16, #tpu.memory_space<vmem>>, %arg2: memref<128x128xbf16, #tpu.memory_space<vmem>>, %arg3: memref<1x128x128xbf16, #tpu.memory_space<vmem>>, %arg4: memref<1x1x128xf32, #tpu.memory_space<vmem>>, %arg5: memref<1x1x128xf32, #tpu.memory_space<vmem>>, %arg6: memref<128x128xf32, #tpu.memory_space<vmem>>, %arg7: memref<128x128xbf16, #tpu.memory_space<vmem>>) attributes {dimension_semantics = [#tpu.dimension_semantics<arbitrary>], iteration_bounds = array<i64: 2>, scalar_prefetch = 0 : i64, scratch_operands = 1 : i64, tpu.core_type = #tpu.core_type<tc>, window_params = [{pipeline_mode = #tpu.pipeline_mode<synchronous>, transform_indices = @transform_0, window_bounds = array<i64: 128, 128>}, {pipeline_mode = #tpu.pipeline_mode<synchronous>, transform_indices = @transform_1, window_bounds = array<i64: 128, 128>}, {transform_indices = @transform_2, window_bounds = array<i64: 1, 128, 128>}, {transform_indices = @transform_3, window_bounds = array<i64: 1, 1, 128>}, {transform_indices = @transform_4, window_bounds = array<i64: 1, 1, 128>}, {pipeline_mode = #tpu.pipeline_mode<synchronous>, transform_indices = @transform_5, window_bounds = array<i64: 128, 128>}]} {
    %c0_i32 = arith.constant 0 : i32
    %0 = arith.cmpi eq, %arg0, %c0_i32 : i32
    %1 = arith.extui %0 : i1 to i32
    %c0_i32_0 = arith.constant 0 : i32
    %2 = arith.cmpi ne, %1, %c0_i32_0 : i32
    scf.if %2 {
      %c0_18 = arith.constant 0 : index
      %c0_19 = arith.constant 0 : index
      %26 = vector.load %arg2[%c0_18, %c0_19] : memref<128x128xbf16, #tpu.memory_space<vmem>>, vector<128x128xbf16>
      %c0_20 = arith.constant 0 : index
      %c0_21 = arith.constant 0 : index
      %27 = vector.load %arg7[%c0_20, %c0_21] : memref<128x128xbf16, #tpu.memory_space<vmem>>, vector<128x128xbf16>
      tpu.vector_store %arg7[%c0_20, %c0_21], %26 {strides = array<i32>} : memref<128x128xbf16, #tpu.memory_space<vmem>>, vector<128x128xbf16>,
    } else {
    }
    %c0 = arith.constant 0 : index
    %c0_1 = arith.constant 0 : index
    %3 = vector.load %arg1[%c0, %c0_1] : memref<128x128xbf16, #tpu.memory_space<vmem>>, vector<128x128xbf16>
    %c0_2 = arith.constant 0 : index
    %c0_3 = arith.constant 0 : index
    %4 = vector.load %arg7[%c0_2, %c0_3] : memref<128x128xbf16, #tpu.memory_space<vmem>>, vector<128x128xbf16>
    %cst = arith.constant dense<0.000000e+00> : vector<128x128xf32>
    %5 = tpu.matmul %3, %4, %cst {dimension_numbers = #tpu.dot_dimension_numbers<[1], [0], [0], [1], [0, 0, 1, 1], [], []>} : vector<128x128xbf16>, vector<128x128xbf16>, vector<128x128xf32> -> vector<128x128xf32>
    %6 = arith.truncf %5 : vector<128x128xf32> to vector<128x128xbf16>
    %c0_4 = arith.constant 0 : index
    %c0_5 = arith.constant 0 : index
    %c0_6 = arith.constant 0 : index
    %7 = vector.load %arg3[%c0_4, %c0_5, %c0_6] : memref<1x128x128xbf16, #tpu.memory_space<vmem>>, vector<1x128x128xbf16>
    %8 = vector.shape_cast %7 : vector<1x128x128xbf16> to vector<128x128xbf16>
    %cst_7 = arith.constant dense<0.000000e+00> : vector<128x128xf32>
    %9 = tpu.matmul %6, %8, %cst_7 {dimension_numbers = #tpu.dot_dimension_numbers<[1], [0], [0], [1], [0, 0, 1, 1], [], []>} : vector<128x128xbf16>, vector<128x128xbf16>, vector<128x128xf32> -> vector<128x128xf32>
    %c0_8 = arith.constant 0 : index
    %c0_9 = arith.constant 0 : index
    %c0_10 = arith.constant 0 : index
    %10 = vector.load %arg4[%c0_8, %c0_9, %c0_10] : memref<1x1x128xf32, #tpu.memory_space<vmem>>, vector<1x1x128xf32>
    %11 = vector.shape_cast %10 : vector<1x1x128xf32> to vector<1x128xf32>
    %12 = vector.broadcast %11 : vector<1x128xf32> to vector<128x128xf32>
    %13 = arith.addf %9, %12 : vector<128x128xf32>
    %cst_11 = arith.constant 0.000000e+00 : f32
    %14 = vector.broadcast %cst_11 : f32 to vector<128x128xf32>
    %15 = arith.cmpf ogt, %13, %14 : vector<128x128xf32>
    %c0_12 = arith.constant 0 : index
    %c0_13 = arith.constant 0 : index
    %c0_14 = arith.constant 0 : index
    %16 = vector.load %arg5[%c0_12, %c0_13, %c0_14] : memref<1x1x128xf32, #tpu.memory_space<vmem>>, vector<1x1x128xf32>
    %17 = vector.shape_cast %16 : vector<1x1x128xf32> to vector<1x128xf32>
    %18 = vector.broadcast %17 : vector<1x128xf32> to vector<128x128xf32>
    %19 = arith.mulf %18, %13 : vector<128x128xf32>
    %20 = arith.select %15, %13, %19 : vector<128x128xi1>, vector<128x128xf32>
    %21 = arith.truncf %20 : vector<128x128xf32> to vector<128x128xbf16>
    %c0_15 = arith.constant 0 : index
    %c0_16 = arith.constant 0 : index
    %22 = vector.load %arg7[%c0_15, %c0_16] : memref<128x128xbf16, #tpu.memory_space<vmem>>, vector<128x128xbf16>
    tpu.vector_store %arg7[%c0_15, %c0_16], %21 {strides = array<i32>} : memref<128x128xbf16, #tpu.memory_space<vmem>>, vector<128x128xbf16>,
    %c1_i32 = arith.constant 1 : i32
    %23 = arith.cmpi eq, %arg0, %c1_i32 : i32
    %24 = arith.extui %23 : i1 to i32
    %c0_i32_17 = arith.constant 0 : i32
    %25 = arith.cmpi ne, %24, %c0_i32_17 : i32
    scf.if %25 {
      %c0_18 = arith.constant 0 : index
      %c0_19 = arith.constant 0 : index
      %26 = vector.load %arg6[%c0_18, %c0_19] : memref<128x128xf32, #tpu.memory_space<vmem>>, vector<128x128xf32>
      tpu.vector_store %arg6[%c0_18, %c0_19], %20 {strides = array<i32>} : memref<128x128xf32, #tpu.memory_space<vmem>>, vector<128x128xf32>,
    } else {
    }
    return
  }
  func.func @transform_0(%arg0: i32) -> (i32, i32) {
    %c0_i32 = arith.constant 0 : i32
    %c0_i32_0 = arith.constant 0 : i32
    %c0_i32_1 = arith.constant 0 : i32
    return %c0_i32, %c0_i32_0 : i32, i32
  }
  func.func @transform_1(%arg0: i32) -> (i32, i32) {
    %c0_i32 = arith.constant 0 : i32
    %c0_i32_0 = arith.constant 0 : i32
    %c0_i32_1 = arith.constant 0 : i32
    return %c0_i32, %c0_i32_0 : i32, i32
  }
  func.func @transform_2(%arg0: i32) -> (i32, i32, i32) {
    %c0_i32 = arith.constant 0 : i32
    %c0_i32_0 = arith.constant 0 : i32
    %c0_i32_1 = arith.constant 0 : i32
    return %arg0, %c0_i32, %c0_i32_0 : i32, i32, i32
  }
  func.func @transform_3(%arg0: i32) -> (i32, i32, i32) {
    %c0_i32 = arith.constant 0 : i32
    %c0_i32_0 = arith.constant 0 : i32
    %c0_i32_1 = arith.constant 0 : i32
    return %arg0, %c0_i32, %c0_i32_0 : i32, i32, i32
  }
  func.func @transform_4(%arg0: i32) -> (i32, i32, i32) {
    %c0_i32 = arith.constant 0 : i32
    %c0_i32_0 = arith.constant 0 : i32
    %c0_i32_1 = arith.constant 0 : i32
    return %arg0, %c0_i32, %c0_i32_0 : i32, i32, i32
  }
  func.func @transform_5(%arg0: i32) -> (i32, i32) {
    %c0_i32 = arith.constant 0 : i32
    %c0_i32_0 = arith.constant 0 : i32
    %c0_i32_1 = arith.constant 0 : i32
    return %c0_i32, %c0_i32_0 : i32, i32
  }
}

module attributes {stable_mosaic.version = 11 : i64} {
  func.func @_fused_gconv_kernel(%arg0: i32, %arg1: memref<128x128xbf16, #tpu.memory_space<vmem>>, %arg2: memref<128x128xbf16, #tpu.memory_space<vmem>>, %arg3: memref<1x128x128xbf16, #tpu.memory_space<vmem>>, %arg4: memref<1x1x128xf32, #tpu.memory_space<vmem>>, %arg5: memref<1x1x128xf32, #tpu.memory_space<vmem>>, %arg6: memref<128x128xf32, #tpu.memory_space<vmem>>, %arg7: memref<128x128xbf16, #tpu.memory_space<vmem>>) attributes {dimension_semantics = [#tpu.dimension_semantics<arbitrary>], iteration_bounds = array<i64: 2>, scalar_prefetch = 0 : i64, scratch_operands = 1 : i64, tpu.core_type = #tpu.core_type<tc>, window_params = [{pipeline_mode = #tpu.pipeline_mode<synchronous>, transform_indices = @transform_0, window_bounds = array<i64: 128, 128>}, {pipeline_mode = #tpu.pipeline_mode<synchronous>, transform_indices = @transform_1, window_bounds = array<i64: 128, 128>}, {transform_indices = @transform_2, window_bounds = array<i64: 1, 128, 128>}, {transform_indices = @transform_3, window_bounds = array<i64: 1, 1, 128>}, {transform_indices = @transform_4, window_bounds = array<i64: 1, 1, 128>}, {pipeline_mode = #tpu.pipeline_mode<synchronous>, transform_indices = @transform_5, window_bounds = array<i64: 128, 128>}]} {
    %c0_i32 = arith.constant 0 : i32
    %0 = arith.cmpi eq, %arg0, %c0_i32 : i32
    %1 = arith.extui %0 : i1 to i32
    %c0_i32_0 = arith.constant 0 : i32
    %2 = arith.cmpi ne, %1, %c0_i32_0 : i32
    scf.if %2 {
      %c0_18 = arith.constant 0 : index
      %c0_19 = arith.constant 0 : index
      %26 = vector.load %arg2[%c0_18, %c0_19] : memref<128x128xbf16, #tpu.memory_space<vmem>>, vector<128x128xbf16>
      %c0_20 = arith.constant 0 : index
      %c0_21 = arith.constant 0 : index
      %27 = vector.load %arg7[%c0_20, %c0_21] : memref<128x128xbf16, #tpu.memory_space<vmem>>, vector<128x128xbf16>
      tpu.vector_store %arg7[%c0_20, %c0_21], %26 {strides = array<i32>} : memref<128x128xbf16, #tpu.memory_space<vmem>>, vector<128x128xbf16>,
    } else {
    }
    %c0 = arith.constant 0 : index
    %c0_1 = arith.constant 0 : index
    %3 = vector.load %arg1[%c0, %c0_1] : memref<128x128xbf16, #tpu.memory_space<vmem>>, vector<128x128xbf16>
    %c0_2 = arith.constant 0 : index
    %c0_3 = arith.constant 0 : index
    %4 = vector.load %arg7[%c0_2, %c0_3] : memref<128x128xbf16, #tpu.memory_space<vmem>>, vector<128x128xbf16>
    %cst = arith.constant dense<0.000000e+00> : vector<128x128xf32>
    %5 = tpu.matmul %3, %4, %cst {dimension_numbers = #tpu.dot_dimension_numbers<[1], [0], [0], [1], [0, 0, 1, 1], [], []>} : vector<128x128xbf16>, vector<128x128xbf16>, vector<128x128xf32> -> vector<128x128xf32>
    %6 = arith.truncf %5 : vector<128x128xf32> to vector<128x128xbf16>
    %c0_4 = arith.constant 0 : index
    %c0_5 = arith.constant 0 : index
    %c0_6 = arith.constant 0 : index
    %7 = vector.load %arg3[%c0_4, %c0_5, %c0_6] : memref<1x128x128xbf16, #tpu.memory_space<vmem>>, vector<1x128x128xbf16>
    %8 = vector.shape_cast %7 : vector<1x128x128xbf16> to vector<128x128xbf16>
    %cst_7 = arith.constant dense<0.000000e+00> : vector<128x128xf32>
    %9 = tpu.matmul %6, %8, %cst_7 {dimension_numbers = #tpu.dot_dimension_numbers<[1], [0], [0], [1], [0, 0, 1, 1], [], []>} : vector<128x128xbf16>, vector<128x128xbf16>, vector<128x128xf32> -> vector<128x128xf32>
    %c0_8 = arith.constant 0 : index
    %c0_9 = arith.constant 0 : index
    %c0_10 = arith.constant 0 : index
    %10 = vector.load %arg4[%c0_8, %c0_9, %c0_10] : memref<1x1x128xf32, #tpu.memory_space<vmem>>, vector<1x1x128xf32>
    %11 = vector.shape_cast %10 : vector<1x1x128xf32> to vector<1x128xf32>
    %12 = vector.broadcast %11 : vector<1x128xf32> to vector<128x128xf32>
    %13 = arith.addf %9, %12 : vector<128x128xf32>
    %cst_11 = arith.constant 0.000000e+00 : f32
    %14 = vector.broadcast %cst_11 : f32 to vector<128x128xf32>
    %15 = arith.cmpf ogt, %13, %14 : vector<128x128xf32>
    %c0_12 = arith.constant 0 : index
    %c0_13 = arith.constant 0 : index
    %c0_14 = arith.constant 0 : index
    %16 = vector.load %arg5[%c0_12, %c0_13, %c0_14] : memref<1x1x128xf32, #tpu.memory_space<vmem>>, vector<1x1x128xf32>
    %17 = vector.shape_cast %16 : vector<1x1x128xf32> to vector<1x128xf32>
    %18 = vector.broadcast %17 : vector<1x128xf32> to vector<128x128xf32>
    %19 = arith.mulf %18, %13 : vector<128x128xf32>
    %20 = arith.select %15, %13, %19 : vector<128x128xi1>, vector<128x128xf32>
    %21 = arith.truncf %20 : vector<128x128xf32> to vector<128x128xbf16>
    %c0_15 = arith.constant 0 : index
    %c0_16 = arith.constant 0 : index
    %22 = vector.load %arg7[%c0_15, %c0_16] : memref<128x128xbf16, #tpu.memory_space<vmem>>, vector<128x128xbf16>
    tpu.vector_store %arg7[%c0_15, %c0_16], %21 {strides = array<i32>} : memref<128x128xbf16, #tpu.memory_space<vmem>>, vector<128x128xbf16>,
    %c1_i32 = arith.constant 1 : i32
    %23 = arith.cmpi eq, %arg0, %c1_i32 : i32
    %24 = arith.extui %23 : i1 to i32
    %c0_i32_17 = arith.constant 0 : i32
    %25 = arith.cmpi ne, %24, %c0_i32_17 : i32
    scf.if %25 {
      %c0_18 = arith.constant 0 : index
      %c0_19 = arith.constant 0 : index
      %26 = vector.load %arg6[%c0_18, %c0_19] : memref<128x128xf32, #tpu.memory_space<vmem>>, vector<128x128xf32>
      tpu.vector_store %arg6[%c0_18, %c0_19], %20 {strides = array<i32>} : memref<128x128xf32, #tpu.memory_space<vmem>>, vector<128x128xf32>,
    } else {
    }
    return
  }
  func.func @transform_0(%arg0: i32) -> (i32, i32) {
    %c0_i32 = arith.constant 0 : i32
    %c0_i32_0 = arith.constant 0 : i32
    %c0_i32_1 = arith.constant 0 : i32
    return %c0_i32, %c0_i32_0 : i32, i32
  }
  func.func @transform_1(%arg0: i32) -> (i32, i32) {
    %c0_i32 = arith.constant 0 : i32
    %c0_i32_0 = arith.constant 0 : i32
    %c0_i32_1 = arith.constant 0 : i32
    return %c0_i32, %c0_i32_0 : i32, i32
  }
  func.func @transform_2(%arg0: i32) -> (i32, i32, i32) {
    %c0_i32 = arith.constant 0 : i32
    %c0_i32_0 = arith.constant 0 : i32
    %c0_i32_1 = arith.constant 0 : i32
    return %arg0, %c0_i32, %c0_i32_0 : i32, i32, i32
  }
  func.func @transform_3(%arg0: i32) -> (i32, i32, i32) {
    %c0_i32 = arith.constant 0 : i32
    %c0_i32_0 = arith.constant 0 : i32
    %c0_i32_1 = arith.constant 0 : i32
    return %arg0, %c0_i32, %c0_i32_0 : i32, i32, i32
  }
  func.func @transform_4(%arg0: i32) -> (i32, i32, i32) {
    %c0_i32 = arith.constant 0 : i32
    %c0_i32_0 = arith.constant 0 : i32
    %c0_i32_1 = arith.constant 0 : i32
    return %arg0, %c0_i32, %c0_i32_0 : i32, i32, i32
  }
  func.func @transform_5(%arg0: i32) -> (i32, i32) {
    %c0_i32 = arith.constant 0 : i32
    %c0_i32_0 = arith.constant 0 : i32
    %c0_i32_1 = arith.constant 0 : i32
    return %c0_i32, %c0_i32_0 : i32, i32
  }
}

</mosaic_0001>

<llo_original>
// kernel: tpu_custom_call.1
$region0: #{tpu_custom_call.1}
  #allocation0 [shape = 'u32[]', space=smem, size = 0x4, offset = 0x4, fixed_abs, tag = 'smem constant byte address 0x4 - core index']
  #allocation1 [shape = 'u32[144,128]{1,0:T(1,128)}', space=vmem, size = 0x12000, scoped, tag = 'internal scratch']
  #allocation2 [shape = 'bf16[128,128]{1,0:T(8,128)(2,1)}', space=vmem, size = 0x8000, scoped, tag = 'scratch operand']
  %s0 = inlined_call_operand.hbm [shape: bf16[128,128], index: 0, kind: input, shape index: {}]
  %s1 = inlined_call_operand.hbm [shape: bf16[128,128], index: 1, kind: input, shape index: {}]
  %s2 = inlined_call_operand.hbm [shape: bf16[2,128,128], index: 2, kind: input, shape index: {}]
  %s3 = inlined_call_operand.vmem [shape: f32[2,1,128], index: 3, kind: input, shape index: {}]
  %s4 = inlined_call_operand.vmem [shape: f32[2,1,128], index: 4, kind: input, shape index: {}]
  %s5 = inlined_call_operand.hbm [shape: f32[128,128], index: 5, kind: output, shape index: {}]
  %s6 = sld [smem:[#allocation0]]
  $region73: #{tpu_custom_call.1} parent=0
    _
  %s8 = ssub.s32 1, %s6
  %s9 = scalar_select 0, %s8, %s6
  $region1: #{tpu_custom_call.1} parent=0
    #allocation3 [shape = 'u8[32768]{0}', space=vmem, size = 0x8000, scoped, tag = 'input window, operand 0, single buffered']
    #allocation4 [shape = 's32[2]{0}', space=sflag, size = 0x8, scoped, tag = 'scoped memory for tpu_custom_call.1']
    #allocation5 [shape = 's32[2]{0}', space=sflag, size = 0x8, scoped, tag = 'scoped memory for tpu_custom_call.1']
    #allocation6 [shape = 'u8[32768]{0}', space=vmem, size = 0x8000, scoped, tag = 'input window, operand 1, single buffered']
    #allocation7 [shape = 's32[1]{0}', space=sflag, size = 0x4, scoped, tag = 'scoped memory for tpu_custom_call.1']
    #allocation8 [shape = 'u8[65536]{0}', space=vmem, size = 0x10000, scoped, tag = 'input window, operand 2']
    #allocation9 [shape = 'u8[65536]{0}', space=vmem, size = 0x10000, scoped, tag = 'output window, operand 0, single buffered']
    %10 = vsyncpa [#allocation4], 0
    %11 = vsyncpa [#allocation7], 0
    %12 = vsyncpa [#allocation5], 0
    loop: start=0, step=1, limit=4
    $region2: #{tpu_custom_call.1} parent=1 // loop_pre_header
      _
    $region3: #{tpu_custom_call.1} parent=1 // loop_header
      %s14 = sphi 0, %s18
      %p15 = scmp.ge.s32.totalorder %s14, 4
      %s22 = sphi 0, %s22
      %s24 = sphi 0, %s22
      %s25 = sphi 0, %s24
      %s39 = sphi 0, %s25
      %s43 = sphi 0, %s43
      %s45 = sphi 0, %s43
      %s46 = sphi 0, %s45
      %s60 = sphi 0, %s46
      %s66 = sphi 0, %s68
      %s69 = sphi 0, %s66
      %s70 = sphi 0, %s69
      %s86 = sphi 0, %s70
      %s92 = sphi 0, %s94
      %s95 = sphi 0, %s92
      %s96 = sphi 0, %s95
      %s112 = sphi 0, %s96
      %s118 = sphi 0, %s120
      %s121 = sphi 0, %s118
      %s122 = sphi 0, %s121
      %s138 = sphi 0, %s122
      %s142 = sphi 0, %s142
      %s144 = sphi 0, %s142
      %s145 = sphi 0, %s144
      %s159 = sphi 0, %s145
    $region4: #{tpu_custom_call.1} parent=1 // loop_header_branch
      %17 = sbr.rel (%p15) target = $region8
    $region5: #{tpu_custom_call.1} parent=1 // loop_body
      %s19 = ssub.s32 %s14, 1
      %s20 = ssub.s32 %s14, 2
      %s21 = sadd.s32 %s14, 1
      %s23 = sadd.s32 %s22, 1
      %p26 = scmp.eq.s32.totalorder %s14, 1
      %p27 = scmp.ne.s32.totalorder %s22, %s24
      %p28 = scmp.eq.s32.totalorder %s14, 0
      %p29 = por %p27, %p28
      %p30 = scmp.ne.s32.totalorder %s22, %s24
      %p31 = scmp.eq.s32.totalorder %s19, 1
      %p32 = por %p30, %p31
      %p33 = scmp.ne.s32.totalorder %s24, %s25
      %p34 = scmp.eq.s32.totalorder %s19, 0
      %p35 = por %p33, %p34
      %p36 = scmp.ne.s32.totalorder %s24, %s25
      %p37 = scmp.eq.s32.totalorder %s20, 1
      %p38 = por %p36, %p37
      %p40 = scmp.ne.s32.totalorder %s25, %s39
      %p41 = scmp.eq.s32.totalorder %s20, 0
      %p42 = por %p40, %p41
      %s44 = sadd.s32 %s43, 1
      %p47 = scmp.eq.s32.totalorder %s14, 1
      %p48 = scmp.ne.s32.totalorder %s43, %s45
      %p49 = scmp.eq.s32.totalorder %s14, 0
      %p50 = por %p48, %p49
      %p51 = scmp.ne.s32.totalorder %s43, %s45
      %p52 = scmp.eq.s32.totalorder %s19, 1
      %p53 = por %p51, %p52
      %p54 = scmp.ne.s32.totalorder %s45, %s46
      %p55 = scmp.eq.s32.totalorder %s19, 0
      %p56 = por %p54, %p55
      %p57 = scmp.ne.s32.totalorder %s45, %s46
      %p58 = scmp.eq.s32.totalorder %s20, 1
      %p59 = por %p57, %p58
      %p61 = scmp.ne.s32.totalorder %s46, %s60
      %p62 = scmp.eq.s32.totalorder %s20, 0
      %p63 = por %p61, %p62
      %s64 = ssub.s32 %s14, %s21
      %p65 = scmp.eq.s32.totalorder %s64, 0
      %s67 = sadd.s32 %s66, 1
      %s68 = scalar_select %p65, %s66, %s67
      %p71 = pneg %p65
      %p72 = scmp.eq.s32.totalorder %s14, 1
      %p73 = por %p71, %p72
      %p74 = scmp.ne.s32.totalorder %s66, %s69
      %p75 = scmp.eq.s32.totalorder %s14, 0
      %p76 = por %p74, %p75
      %p77 = scmp.ne.s32.totalorder %s66, %s69
      %p78 = scmp.eq.s32.totalorder %s19, 1
      %p79 = por %p77, %p78
      %p80 = scmp.ne.s32.totalorder %s69, %s70
      %p81 = scmp.eq.s32.totalorder %s19, 0
      %p82 = por %p80, %p81
      %p83 = scmp.ne.s32.totalorder %s69, %s70
      %p84 = scmp.eq.s32.totalorder %s20, 1
      %p85 = por %p83, %p84
      %p87 = scmp.ne.s32.totalorder %s70, %s86
      %p88 = scmp.eq.s32.totalorder %s20, 0
      %p89 = por %p87, %p88
      %s90 = ssub.s32 %s14, %s21
      %p91 = scmp.eq.s32.totalorder %s90, 0
      %s93 = sadd.s32 %s92, 1
      %s94 = scalar_select %p91, %s92, %s93
      %p97 = pneg %p91
      %p98 = scmp.eq.s32.totalorder %s14, 1
      %p99 = por %p97, %p98
      %p100 = scmp.ne.s32.totalorder %s92, %s95
      %p101 = scmp.eq.s32.totalorder %s14, 0
      %p102 = por %p100, %p101
      %p103 = scmp.ne.s32.totalorder %s92, %s95
      %p104 = scmp.eq.s32.totalorder %s19, 1
      %p105 = por %p103, %p104
      %p106 = scmp.ne.s32.totalorder %s95, %s96
      %p107 = scmp.eq.s32.totalorder %s19, 0
      %p108 = por %p106, %p107
      %p109 = scmp.ne.s32.totalorder %s95, %s96
      %p110 = scmp.eq.s32.totalorder %s20, 1
      %p111 = por %p109, %p110
      %p113 = scmp.ne.s32.totalorder %s96, %s112
      %p114 = scmp.eq.s32.totalorder %s20, 0
      %p115 = por %p113, %p114
      %s116 = ssub.s32 %s14, %s21
      %p117 = scmp.eq.s32.totalorder %s116, 0
      %s119 = sadd.s32 %s118, 1
      %s120 = scalar_select %p117, %s118, %s119
      %p123 = pneg %p117
      %p124 = scmp.eq.s32.totalorder %s14, 1
      %p125 = por %p123, %p124
      %p126 = scmp.ne.s32.totalorder %s118, %s121
      %p127 = scmp.eq.s32.totalorder %s14, 0
      %p128 = por %p126, %p127
      %p129 = scmp.ne.s32.totalorder %s118, %s121
      %p130 = scmp.eq.s32.totalorder %s19, 1
      %p131 = por %p129, %p130
      %p132 = scmp.ne.s32.totalorder %s121, %s122
      %p133 = scmp.eq.s32.totalorder %s19, 0
      %p134 = por %p132, %p133
      %p135 = scmp.ne.s32.totalorder %s121, %s122
      %p136 = scmp.eq.s32.totalorder %s20, 1
      %p137 = por %p135, %p136
      %p139 = scmp.ne.s32.totalorder %s122, %s138
      %p140 = scmp.eq.s32.totalorder %s20, 0
      %p141 = por %p139, %p140
      %s143 = sadd.s32 %s142, 1
      %p146 = scmp.eq.s32.totalorder %s14, 1
      %p147 = scmp.ne.s32.totalorder %s142, %s144
      %p148 = scmp.eq.s32.totalorder %s14, 0
      %p149 = por %p147, %p148
      %p150 = scmp.ne.s32.totalorder %s142, %s144
      %p151 = scmp.eq.s32.totalorder %s19, 1
      %p152 = por %p150, %p151
      %p153 = scmp.ne.s32.totalorder %s144, %s145
      %p154 = scmp.eq.s32.totalorder %s19, 0
      %p155 = por %p153, %p154
      %p156 = scmp.ne.s32.totalorder %s144, %s145
      %p157 = scmp.eq.s32.totalorder %s20, 1
      %p158 = por %p156, %p157
      %p160 = scmp.ne.s32.totalorder %s145, %s159
      %p161 = scmp.eq.s32.totalorder %s20, 0
      %p162 = por %p160, %p161
      %p163 = scmp.le.s32.totalorder 1, %s14
      %p164 = scmp.lt.s32.totalorder %s14, 3
      %p165 = pnand %p163, %p164
      %p166 = pneg %p165
      // Predicated region
      $region9: #{tpu_custom_call.1} parent=5 // pred_check
        _
      $region10: #{tpu_custom_call.1} parent=5 // pred_check_branch
        %168 = sbr.rel (%p165) target = $region12
      $region11: #{tpu_custom_call.1} parent=5 // pred_region
        %s169 = ssub.s32 %s14, 1
        // Predicated region
        $region13: #{tpu_custom_call.1} parent=11 // pred_check
          %p170 = pneg %p35
        $region14: #{tpu_custom_call.1} parent=11 // pred_check_branch
          %172 = sbr.rel (%p170) target = $region16
        $region15: #{tpu_custom_call.1} parent=11 // pred_region
          %s174 = ssub.s32 1024, 1024
          %175 = vsyncadd [#allocation4], %s174
          %s176 = sshll.u32 [#allocation3], 4
          %s177 = int_to_ptr.vmem [resolvable:$true] %s176
          %182 = dma.hbm_to_vmem [thread:$0]  %s0, 1024, %s177, [#allocation4], 64, 64, 4
        $region16: #{tpu_custom_call.1} parent=11 // pred_fallthru
          _
        // Predicated region
        $region17: #{tpu_custom_call.1} parent=11 // pred_check
          %p183 = pneg %p56
        $region18: #{tpu_custom_call.1} parent=11 // pred_check_branch
          %185 = sbr.rel (%p183) target = $region20
        $region19: #{tpu_custom_call.1} parent=11 // pred_region
          %s187 = ssub.s32 1024, 1024
          %188 = vsyncadd [#allocation7], %s187
          %s189 = sshll.u32 [#allocation6], 4
          %s190 = int_to_ptr.vmem [resolvable:$true] %s189
          %195 = dma.hbm_to_vmem [thread:$0]  %s1, 1024, %s190, [#allocation7], 64, 64, 4
        $region20: #{tpu_custom_call.1} parent=11 // pred_fallthru
          _
      $region12: #{tpu_custom_call.1} parent=5 // pred_fallthru
        _
      %p196 = scmp.lt.s32.totalorder %s14, 2
      // Predicated region
      $region21: #{tpu_custom_call.1} parent=5 // pred_check
        %p197 = pneg %p196
      $region22: #{tpu_custom_call.1} parent=5 // pred_check_branch
        %199 = sbr.rel (%p197) target = $region24
      $region23: #{tpu_custom_call.1} parent=5 // pred_region
        // Predicated region
        $region25: #{tpu_custom_call.1} parent=23 // pred_check
          %p200 = pneg %p76
        $region26: #{tpu_custom_call.1} parent=23 // pred_check_branch
          %202 = sbr.rel (%p200) target = $region28
        $region27: #{tpu_custom_call.1} parent=23 // pred_region
          %s203 = sand.u32 %s14, 1
          %s204 = scalar_lea.sflag [#allocation4], %s203
          %s205 = sand.u32 %s66, 1
          %s206 = smul.addr %s205, 64
          %s207 = scalar_lea.vmem [#allocation8], %s206
          %s209 = ssub.s32 1024, 1024
          %210 = vsyncadd %s204, %s209
          %s211 = smul.addr %s14, 16
          %s212 = smul.addr %s211, 64
          %s213 = scalar_lea.hbm %s2, %s212
          %s214 = sshll.u32 %s207, 4
          %s215 = int_to_ptr.vmem [resolvable:$true] %s214
          %220 = dma.hbm_to_vmem [thread:$0]  %s213, 1024, %s215, %s204, 64, 64, 4
        $region28: #{tpu_custom_call.1} parent=23 // pred_fallthru
          _
        // Predicated region
        $region29: #{tpu_custom_call.1} parent=23 // pred_check
          %p221 = pneg %p102
        $region30: #{tpu_custom_call.1} parent=23 // pred_check_branch
          %223 = sbr.rel (%p221) target = $region32
        $region31: #{tpu_custom_call.1} parent=23 // pred_region
          %p224 = scmp.lt.s32.totalorder %s14, 1
          %s225 = scalar_select %p224, %s14, 1
          %s226 = scalar_lea.vmem %s3, %s225
        $region32: #{tpu_custom_call.1} parent=23 // pred_fallthru
          _
        // Predicated region
        $region33: #{tpu_custom_call.1} parent=23 // pred_check
          %p227 = pneg %p128
        $region34: #{tpu_custom_call.1} parent=23 // pred_check_branch
          %229 = sbr.rel (%p227) target = $region36
        $region35: #{tpu_custom_call.1} parent=23 // pred_region
          %p230 = scmp.lt.s32.totalorder %s14, 1
          %s231 = scalar_select %p230, %s14, 1
          %s232 = scalar_lea.vmem %s4, %s231
        $region36: #{tpu_custom_call.1} parent=23 // pred_fallthru
          _
      $region24: #{tpu_custom_call.1} parent=5 // pred_fallthru
        _
      %p233 = scmp.le.s32.totalorder 1, %s14
      %p234 = scmp.lt.s32.totalorder %s14, 3
      %p235 = pnand %p233, %p234
      %p236 = pneg %p235
      // Predicated region
      $region37: #{tpu_custom_call.1} parent=5 // pred_check
        _
      $region38: #{tpu_custom_call.1} parent=5 // pred_check_branch
        %238 = sbr.rel (%p235) target = $region40
      $region39: #{tpu_custom_call.1} parent=5 // pred_region
        %s239 = ssub.s32 %s14, 1
        // Predicated region
        $region41: #{tpu_custom_call.1} parent=39 // pred_check
          %p240 = pneg %p35
        $region42: #{tpu_custom_call.1} parent=39 // pred_check_branch
          %242 = sbr.rel (%p240) target = $region44
        $region43: #{tpu_custom_call.1} parent=39 // pred_region
          %243 = dma.done [#allocation4], 1024
        $region44: #{tpu_custom_call.1} parent=39 // pred_fallthru
          _
        // Predicated region
        $region45: #{tpu_custom_call.1} parent=39 // pred_check
          %p244 = pneg %p56
        $region46: #{tpu_custom_call.1} parent=39 // pred_check_branch
          %246 = sbr.rel (%p244) target = $region48
        $region47: #{tpu_custom_call.1} parent=39 // pred_region
          %247 = dma.done [#allocation7], 1024
        $region48: #{tpu_custom_call.1} parent=39 // pred_fallthru
          _
        %s248 = sand.u32 %s19, 1
        %s249 = scalar_lea.sflag [#allocation4], %s248
        %s250 = sand.u32 %s69, 1
        %s251 = smul.addr %s250, 64
        %s252 = scalar_lea.vmem [#allocation8], %s251
        // Predicated region
        $region49: #{tpu_custom_call.1} parent=39 // pred_check
          %p253 = pneg %p82
        $region50: #{tpu_custom_call.1} parent=39 // pred_check_branch
          %255 = sbr.rel (%p253) target = $region52
        $region51: #{tpu_custom_call.1} parent=39 // pred_region
          %256 = dma.done %s249, 1024
        $region52: #{tpu_custom_call.1} parent=39 // pred_fallthru
          _
        %p257 = pneg %p35
        %p258 = pneg %p32
        %p259 = pneg %p56
        %p260 = pneg %p53
        %s261 = sand.u32 %s19, 1
        %s262 = scalar_lea.sflag [#allocation4], %s261
        %s263 = sand.u32 %s69, 1
        %s264 = smul.addr %s263, 64
        %s265 = scalar_lea.vmem [#allocation8], %s264
        %p266 = pneg %p82
        %p267 = pneg %p79
        %p268 = scmp.lt.s32.totalorder %s19, 1
        %s269 = scalar_select %p268, %s19, 1
        %s270 = scalar_lea.vmem %s3, %s269
        %p271 = pneg %p108
        %p272 = pneg %p105
        %p273 = scmp.lt.s32.totalorder %s19, 1
        %s274 = scalar_select %p273, %s19, 1
        %s275 = scalar_lea.vmem %s4, %s274
        %p276 = pneg %p134
        %p277 = pneg %p131
        %p278 = pneg %p155
        %p279 = pneg %p152
        %p280 = scmp.lt.s32.totalorder %s19, 1
        %s281 = scalar_select %p280, %s19, 1
        %s282 = scalar_lea.vmem %s3, %s281
        %p283 = scmp.lt.s32.totalorder %s19, 1
        %s284 = scalar_select %p283, %s19, 1
        %s285 = scalar_lea.vmem %s4, %s284
        %p287 = scmp.eq.s32.totalorder %s19, 0
        // Predicated region
        $region53: #{tpu_custom_call.1} parent=39 // pred_check
          %p288 = pneg %p287
        $region54: #{tpu_custom_call.1} parent=39 // pred_check_branch
          %290 = sbr.rel (%p288) target = $region56
        $region55: #{tpu_custom_call.1} parent=39 // pred_region
          %v291 = vld [vmem:[#allocation6] sm:$0xf]
          %v292 = vld [vmem:[#allocation6 + $0x4] sm:$0xf]
          %v293 = vld [vmem:[#allocation6 + $0x8] sm:$0xf]
          %v294 = vld [vmem:[#allocation6 + $0xc] sm:$0xf]
          %v295 = vld [vmem:[#allocation6 + $0x10] sm:$0xf]
          %v296 = vld [vmem:[#allocation6 + $0x14] sm:$0xf]
          %v297 = vld [vmem:[#allocation6 + $0x18] sm:$0xf]
          %v298 = vld [vmem:[#allocation6 + $0x1c] sm:$0xf]
          %v299 = vld [vmem:[#allocation6 + $0x20] sm:$0xf]
          %v300 = vld [vmem:[#allocation6 + $0x24] sm:$0xf]
          %v301 = vld [vmem:[#allocation6 + $0x28] sm:$0xf]
          %v302 = vld [vmem:[#allocation6 + $0x2c] sm:$0xf]
          %v303 = vld [vmem:[#allocation6 + $0x30] sm:$0xf]
          %v304 = vld [vmem:[#allocation6 + $0x34] sm:$0xf]
          %v305 = vld [vmem:[#allocation6 + $0x38] sm:$0xf]
          %v306 = vld [vmem:[#allocation6 + $0x3c] sm:$0xf]
          %307 = vst [vmem:[#allocation2] sm:$0xf] %v291
          %308 = vst [vmem:[#allocation2 + $0x4] sm:$0xf] %v292
          %309 = vst [vmem:[#allocation2 + $0x8] sm:$0xf] %v293
          %310 = vst [vmem:[#allocation2 + $0xc] sm:$0xf] %v294
          %311 = vst [vmem:[#allocation2 + $0x10] sm:$0xf] %v295
          %312 = vst [vmem:[#allocation2 + $0x14] sm:$0xf] %v296
          %313 = vst [vmem:[#allocation2 + $0x18] sm:$0xf] %v297
          %314 = vst [vmem:[#allocation2 + $0x1c] sm:$0xf] %v298
          %315 = vst [vmem:[#allocation2 + $0x20] sm:$0xf] %v299
          %316 = vst [vmem:[#allocation2 + $0x24] sm:$0xf] %v300
          %317 = vst [vmem:[#allocation2 + $0x28] sm:$0xf] %v301
          %318 = vst [vmem:[#allocation2 + $0x2c] sm:$0xf] %v302
          %319 = vst [vmem:[#allocation2 + $0x30] sm:$0xf] %v303
          %320 = vst [vmem:[#allocation2 + $0x34] sm:$0xf] %v304
          %321 = vst [vmem:[#allocation2 + $0x38] sm:$0xf] %v305
          %322 = vst [vmem:[#allocation2 + $0x3c] sm:$0xf] %v306
        $region56: #{tpu_custom_call.1} parent=39 // pred_fallthru
          _
        %v323 = vld [vmem:[#allocation3] sm:$0xf]
        %v324 = vld [vmem:[#allocation3 + $0x4] sm:$0xf]
        %v325 = vld [vmem:[#allocation3 + $0x8] sm:$0xf]
        %v326 = vld [vmem:[#allocation3 + $0xc] sm:$0xf]
        %v327 = vld [vmem:[#allocation3 + $0x10] sm:$0xf]
        %v328 = vld [vmem:[#allocation3 + $0x14] sm:$0xf]
        %v329 = vld [vmem:[#allocation3 + $0x18] sm:$0xf]
        %v330 = vld [vmem:[#allocation3 + $0x1c] sm:$0xf]
        %v331 = vld [vmem:[#allocation3 + $0x20] sm:$0xf]
        %v332 = vld [vmem:[#allocation3 + $0x24] sm:$0xf]
        %v333 = vld [vmem:[#allocation3 + $0x28] sm:$0xf]
        %v334 = vld [vmem:[#allocation3 + $0x2c] sm:$0xf]
        %v335 = vld [vmem:[#allocation3 + $0x30] sm:$0xf]
        %v336 = vld [vmem:[#allocation3 + $0x34] sm:$0xf]
        %v337 = vld [vmem:[#allocation3 + $0x38] sm:$0xf]
        %v338 = vld [vmem:[#allocation3 + $0x3c] sm:$0xf]
        %v339 = vld [vmem:[#allocation2] sm:$0xf]
        %v340 = vld [vmem:[#allocation2 + $0x4] sm:$0xf]
        %v341 = vld [vmem:[#allocation2 + $0x8] sm:$0xf]
        %v342 = vld [vmem:[#allocation2 + $0xc] sm:$0xf]
        %v343 = vld [vmem:[#allocation2 + $0x10] sm:$0xf]
        %v344 = vld [vmem:[#allocation2 + $0x14] sm:$0xf]
        %v345 = vld [vmem:[#allocation2 + $0x18] sm:$0xf]
        %v346 = vld [vmem:[#allocation2 + $0x1c] sm:$0xf]
        %v347 = vld [vmem:[#allocation2 + $0x20] sm:$0xf]
        %v348 = vld [vmem:[#allocation2 + $0x24] sm:$0xf]
        %v349 = vld [vmem:[#allocation2 + $0x28] sm:$0xf]
        %v350 = vld [vmem:[#allocation2 + $0x2c] sm:$0xf]
        %v351 = vld [vmem:[#allocation2 + $0x30] sm:$0xf]
        %v352 = vld [vmem:[#allocation2 + $0x34] sm:$0xf]
        %v353 = vld [vmem:[#allocation2 + $0x38] sm:$0xf]
        %v354 = vld [vmem:[#allocation2 + $0x3c] sm:$0xf]
        %v371 = vunpack.c.l.b16 %v323
        %v372 = vunpack.c.l.b16 %v324
        %v373 = vunpack.c.l.b16 %v325
        %v374 = vunpack.c.l.b16 %v326
        %v375 = vunpack.c.l.b16 %v327
        %v376 = vunpack.c.l.b16 %v328
        %v377 = vunpack.c.l.b16 %v329
        %v378 = vunpack.c.l.b16 %v330
        %v379 = vunpack.c.l.b16 %v331
        %v380 = vunpack.c.l.b16 %v332
        %v381 = vunpack.c.l.b16 %v333
        %v382 = vunpack.c.l.b16 %v334
        %v383 = vunpack.c.l.b16 %v335
        %v384 = vunpack.c.l.b16 %v336
        %v385 = vunpack.c.l.b16 %v337
        %v386 = vunpack.c.l.b16 %v338
        %v387 = vpack.c.b16 %v372, %v371
        %v388 = vpack.c.b16 %v374, %v373
        %v389 = vpack.c.b16 %v376, %v375
        %v390 = vpack.c.b16 %v378, %v377
        %v391 = vpack.c.b16 %v380, %v379
        %v392 = vpack.c.b16 %v382, %v381
        %v393 = vpack.c.b16 %v384, %v383
        %v394 = vpack.c.b16 %v386, %v385
        %v419 = vunpack.c.l.b16 %v339
        %v420 = vunpack.c.l.b16 %v340
        %v421 = vunpack.c.l.b16 %v341
        %v422 = vunpack.c.l.b16 %v342
        %v423 = vunpack.c.l.b16 %v343
        %v424 = vunpack.c.l.b16 %v344
        %v425 = vunpack.c.l.b16 %v345
        %v426 = vunpack.c.l.b16 %v346
        %v427 = vunpack.c.l.b16 %v347
        %v428 = vunpack.c.l.b16 %v348
        %v429 = vunpack.c.l.b16 %v349
        %v430 = vunpack.c.l.b16 %v350
        %v431 = vunpack.c.l.b16 %v351
        %v432 = vunpack.c.l.b16 %v352
        %v433 = vunpack.c.l.b16 %v353
        %v434 = vunpack.c.l.b16 %v354
        %v435 = vpack.c.b16 %v420, %v419
        %v436 = vpack.c.b16 %v422, %v421
        %v437 = vpack.c.b16 %v424, %v423
        %v438 = vpack.c.b16 %v426, %v425
        %v439 = vpack.c.b16 %v428, %v427
        %v440 = vpack.c.b16 %v430, %v429
        %v441 = vpack.c.b16 %v432, %v431
        %v442 = vpack.c.b16 %v434, %v433
        %451 = vmatprep.subr.bf16.mxu0 0
        %452 = vmatpush1.bf16.msra.mxu0 %v442
        %453 = vmatprep.subr.bf16.mxu0 0
        %454 = vmatpush1.bf16.msra.mxu0 %v441
        %455 = vmatprep.subr.bf16.mxu0 0
        %456 = vmatpush1.bf16.msra.mxu0 %v440
        %457 = vmatprep.subr.bf16.mxu0 0
        %458 = vmatpush1.bf16.msra.mxu0 %v439
        %459 = vmatprep.subr.bf16.mxu0 0
        %460 = vmatpush1.bf16.msra.mxu0 %v438
        %461 = vmatprep.subr.bf16.mxu0 0
        %462 = vmatpush1.bf16.msra.mxu0 %v437
        %463 = vmatprep.subr.bf16.mxu0 0
        %464 = vmatpush1.bf16.msra.mxu0 %v436
        %465 = vmatprep.subr.bf16.mxu0 0
        %466 = vmatpush1.bf16.msra.mxu0 %v435
        %467 = vmatprep.subr.bf16.mxu0 0
        %468 = vmatpush2.bf16.msra.mxu0 0
        %469 = vmatprep.subr.bf16.mxu0 0
        %470 = vmatpush2.bf16.msra.mxu0 0
        %471 = vmatprep.subr.bf16.mxu0 0
        %472 = vmatpush2.bf16.msra.mxu0 0
        %473 = vmatprep.subr.bf16.mxu0 0
        %474 = vmatpush2.bf16.msra.mxu0 0
        %475 = vmatprep.subr.bf16.mxu0 0
        %476 = vmatpush2.bf16.msra.mxu0 0
        %477 = vmatprep.subr.bf16.mxu0 0
        %478 = vmatpush2.bf16.msra.mxu0 0
        %479 = vmatprep.subr.bf16.mxu0 0
        %480 = vmatpush2.bf16.msra.mxu0 0
        %481 = vmatprep.subr.bf16.mxu0 0
        %482 = vmatpush2.bf16.msra.mxu0 0
        %483 = vmatprep.mubr.bf16.mxu0 0
        %484 = vmatmul.mubr.bf16.gmra.mxu0 %v387
        %v485 = vpop.f32.mrf.mxu0
        %v486 = vadd.f32 0.0, %v485
        %v487 = vpop.f32.mrf.mxu0
        %v488 = vpop.f32.mrf.mxu0
        %v489 = vadd.f32 0.0, %v488
        %v490 = vpop.f32.mrf.mxu0
        %491 = vmatprep.mubr.bf16.mxu0 0
        %492 = vmatmul.mubr.bf16.gmra.mxu0 %v388
        %v493 = vpop.f32.mrf.mxu0
        %v494 = vadd.f32 0.0, %v493
        %v495 = vpop.f32.mrf.mxu0
        %v496 = vpop.f32.mrf.mxu0
        %v497 = vadd.f32 0.0, %v496
        %v498 = vpop.f32.mrf.mxu0
        %499 = vmatprep.mubr.bf16.mxu0 0
        %500 = vmatmul.mubr.bf16.gmra.mxu0 %v389
        %v501 = vpop.f32.mrf.mxu0
        %v502 = vadd.f32 0.0, %v501
        %v503 = vpop.f32.mrf.mxu0
        %v504 = vpop.f32.mrf.mxu0
        %v505 = vadd.f32 0.0, %v504
        %v506 = vpop.f32.mrf.mxu0
        %507 = vmatprep.mubr.bf16.mxu0 0
        %508 = vmatmul.mubr.bf16.gmra.mxu0 %v390
        %v509 = vpop.f32.mrf.mxu0
        %v510 = vadd.f32 0.0, %v509
        %v511 = vpop.f32.mrf.mxu0
        %v512 = vpop.f32.mrf.mxu0
        %v513 = vadd.f32 0.0, %v512
        %v514 = vpop.f32.mrf.mxu0
        %515 = vmatprep.mubr.bf16.mxu0 0
        %516 = vmatmul.mubr.bf16.gmra.mxu0 %v391
        %v517 = vpop.f32.mrf.mxu0
        %v518 = vadd.f32 0.0, %v517
        %v519 = vpop.f32.mrf.mxu0
        %v520 = vpop.f32.mrf.mxu0
        %v521 = vadd.f32 0.0, %v520
        %v522 = vpop.f32.mrf.mxu0
        %523 = vmatprep.mubr.bf16.mxu0 0
        %524 = vmatmul.mubr.bf16.gmra.mxu0 %v392
        %v525 = vpop.f32.mrf.mxu0
        %v526 = vadd.f32 0.0, %v525
        %v527 = vpop.f32.mrf.mxu0
        %v528 = vpop.f32.mrf.mxu0
        %v529 = vadd.f32 0.0, %v528
        %v530 = vpop.f32.mrf.mxu0
        %531 = vmatprep.mubr.bf16.mxu0 0
        %532 = vmatmul.mubr.bf16.gmra.mxu0 %v393
        %v533 = vpop.f32.mrf.mxu0
        %v534 = vadd.f32 0.0, %v533
        %v535 = vpop.f32.mrf.mxu0
        %v536 = vpop.f32.mrf.mxu0
        %v537 = vadd.f32 0.0, %v536
        %v538 = vpop.f32.mrf.mxu0
        %539 = vmatprep.mubr.bf16.mxu0 0
        %540 = vmatmul.mubr.bf16.gmra.mxu0 %v394
        %v541 = vpop.f32.mrf.mxu0
        %v542 = vadd.f32 0.0, %v541
        %v543 = vpop.f32.mrf.mxu0
        %v544 = vpop.f32.mrf.mxu0
        %v545 = vadd.f32 0.0, %v544
        %v546 = vpop.f32.mrf.mxu0
        %547 = vdwg.mxu0
        %v548 = vpack.c.bf16 %v489, %v486
        %v549 = vpack.c.bf16 %v497, %v494
        %v550 = vpack.c.bf16 %v505, %v502
        %v551 = vpack.c.bf16 %v513, %v510
        %v552 = vpack.c.bf16 %v521, %v518
        %v553 = vpack.c.bf16 %v529, %v526
        %v554 = vpack.c.bf16 %v537, %v534
        %v555 = vpack.c.bf16 %v545, %v542
        %v556 = vld [vmem:[%s252] sm:$0xf]
        %v557 = vld [vmem:[%s252 + $0x4] sm:$0xf]
        %v558 = vld [vmem:[%s252 + $0x8] sm:$0xf]
        %v559 = vld [vmem:[%s252 + $0xc] sm:$0xf]
        %v560 = vld [vmem:[%s252 + $0x10] sm:$0xf]
        %v561 = vld [vmem:[%s252 + $0x14] sm:$0xf]
        %v562 = vld [vmem:[%s252 + $0x18] sm:$0xf]
        %v563 = vld [vmem:[%s252 + $0x1c] sm:$0xf]
        %v564 = vld [vmem:[%s252 + $0x20] sm:$0xf]
        %v565 = vld [vmem:[%s252 + $0x24] sm:$0xf]
        %v566 = vld [vmem:[%s252 + $0x28] sm:$0xf]
        %v567 = vld [vmem:[%s252 + $0x2c] sm:$0xf]
        %v568 = vld [vmem:[%s252 + $0x30] sm:$0xf]
        %v569 = vld [vmem:[%s252 + $0x34] sm:$0xf]
        %v570 = vld [vmem:[%s252 + $0x38] sm:$0xf]
        %v571 = vld [vmem:[%s252 + $0x3c] sm:$0xf]
        %v572 = vld [vmem:[%s282] sm:$0x1]
        %v574 = vlaneseq
        %v575 = vshrl.u32 %v574, 7
        %v576 = vsub.s32 0, %v575
        %v577 = vrot.slane %v572, %v576
        %v595 = vunpack.c.l.b16 %v556
        %v596 = vunpack.c.l.b16 %v557
        %v597 = vunpack.c.l.b16 %v558
        %v598 = vunpack.c.l.b16 %v559
        %v599 = vunpack.c.l.b16 %v560
        %v600 = vunpack.c.l.b16 %v561
        %v601 = vunpack.c.l.b16 %v562
        %v602 = vunpack.c.l.b16 %v563
        %v603 = vunpack.c.l.b16 %v564
        %v604 = vunpack.c.l.b16 %v565
        %v605 = vunpack.c.l.b16 %v566
        %v606 = vunpack.c.l.b16 %v567
        %v607 = vunpack.c.l.b16 %v568
        %v608 = vunpack.c.l.b16 %v569
        %v609 = vunpack.c.l.b16 %v570
        %v610 = vunpack.c.l.b16 %v571
        %v611 = vpack.c.b16 %v596, %v595
        %v612 = vpack.c.b16 %v598, %v597
        %v613 = vpack.c.b16 %v600, %v599
        %v614 = vpack.c.b16 %v602, %v601
        %v615 = vpack.c.b16 %v604, %v603
        %v616 = vpack.c.b16 %v606, %v605
        %v617 = vpack.c.b16 %v608, %v607
        %v618 = vpack.c.b16 %v610, %v609
        %627 = vmatprep.subr.bf16.mxu0 0
        %628 = vmatpush1.bf16.msra.mxu0 %v618
        %629 = vmatprep.subr.bf16.mxu0 0
        %630 = vmatpush1.bf16.msra.mxu0 %v617
        %631 = vmatprep.subr.bf16.mxu0 0
        %632 = vmatpush1.bf16.msra.mxu0 %v616
        %633 = vmatprep.subr.bf16.mxu0 0
        %634 = vmatpush1.bf16.msra.mxu0 %v615
        %635 = vmatprep.subr.bf16.mxu0 0
        %636 = vmatpush1.bf16.msra.mxu0 %v614
        %637 = vmatprep.subr.bf16.mxu0 0
        %638 = vmatpush1.bf16.msra.mxu0 %v613
        %639 = vmatprep.subr.bf16.mxu0 0
        %640 = vmatpush1.bf16.msra.mxu0 %v612
        %641 = vmatprep.subr.bf16.mxu0 0
        %642 = vmatpush1.bf16.msra.mxu0 %v611
        %643 = vmatprep.subr.bf16.mxu0 0
        %644 = vmatpush2.bf16.msra.mxu0 0
        %645 = vmatprep.subr.bf16.mxu0 0
        %646 = vmatpush2.bf16.msra.mxu0 0
        %647 = vmatprep.subr.bf16.mxu0 0
        %648 = vmatpush2.bf16.msra.mxu0 0
        %649 = vmatprep.subr.bf16.mxu0 0
        %650 = vmatpush2.bf16.msra.mxu0 0
        %651 = vmatprep.subr.bf16.mxu0 0
        %652 = vmatpush2.bf16.msra.mxu0 0
        %653 = vmatprep.subr.bf16.mxu0 0
        %654 = vmatpush2.bf16.msra.mxu0 0
        %655 = vmatprep.subr.bf16.mxu0 0
        %656 = vmatpush2.bf16.msra.mxu0 0
        %657 = vmatprep.subr.bf16.mxu0 0
        %658 = vmatpush2.bf16.msra.mxu0 0
        %659 = vmatprep.mubr.bf16.mxu0 0
        %660 = vmatmul.mubr.bf16.gmra.mxu0 %v548
        %v661 = vpop.f32.mrf.mxu0
        %v662 = vadd.f32 %v577, %v661
        %v663 = vpop.f32.mrf.mxu0
        %v664 = vpop.f32.mrf.mxu0
        %v665 = vadd.f32 %v577, %v664
        %v666 = vpop.f32.mrf.mxu0
        %667 = vmatprep.mubr.bf16.mxu0 0
        %668 = vmatmul.mubr.bf16.gmra.mxu0 %v549
        %v669 = vpop.f32.mrf.mxu0
        %v670 = vadd.f32 %v577, %v669
        %v671 = vpop.f32.mrf.mxu0
        %v672 = vpop.f32.mrf.mxu0
        %v673 = vadd.f32 %v577, %v672
        %v674 = vpop.f32.mrf.mxu0
        %675 = vmatprep.mubr.bf16.mxu0 0
        %676 = vmatmul.mubr.bf16.gmra.mxu0 %v550
        %v677 = vpop.f32.mrf.mxu0
        %v678 = vadd.f32 %v577, %v677
        %v679 = vpop.f32.mrf.mxu0
        %v680 = vpop.f32.mrf.mxu0
        %v681 = vadd.f32 %v577, %v680
        %v682 = vpop.f32.mrf.mxu0
        %683 = vmatprep.mubr.bf16.mxu0 0
        %684 = vmatmul.mubr.bf16.gmra.mxu0 %v551
        %v685 = vpop.f32.mrf.mxu0
        %v686 = vadd.f32 %v577, %v685
        %v687 = vpop.f32.mrf.mxu0
        %v688 = vpop.f32.mrf.mxu0
        %v689 = vadd.f32 %v577, %v688
        %v690 = vpop.f32.mrf.mxu0
        %691 = vmatprep.mubr.bf16.mxu0 0
        %692 = vmatmul.mubr.bf16.gmra.mxu0 %v552
        %v693 = vpop.f32.mrf.mxu0
        %v694 = vadd.f32 %v577, %v693
        %v695 = vpop.f32.mrf.mxu0
        %v696 = vpop.f32.mrf.mxu0
        %v697 = vadd.f32 %v577, %v696
        %v698 = vpop.f32.mrf.mxu0
        %699 = vmatprep.mubr.bf16.mxu0 0
        %700 = vmatmul.mubr.bf16.gmra.mxu0 %v553
        %v701 = vpop.f32.mrf.mxu0
        %v702 = vadd.f32 %v577, %v701
        %v703 = vpop.f32.mrf.mxu0
        %v704 = vpop.f32.mrf.mxu0
        %v705 = vadd.f32 %v577, %v704
        %v706 = vpop.f32.mrf.mxu0
        %707 = vmatprep.mubr.bf16.mxu0 0
        %708 = vmatmul.mubr.bf16.gmra.mxu0 %v554
        %v709 = vpop.f32.mrf.mxu0
        %v710 = vadd.f32 %v577, %v709
        %v711 = vpop.f32.mrf.mxu0
        %v712 = vpop.f32.mrf.mxu0
        %v713 = vadd.f32 %v577, %v712
        %v714 = vpop.f32.mrf.mxu0
        %715 = vmatprep.mubr.bf16.mxu0 0
        %716 = vmatmul.mubr.bf16.gmra.mxu0 %v555
        %v717 = vpop.f32.mrf.mxu0
        %v718 = vadd.f32 %v577, %v717
        %v719 = vpop.f32.mrf.mxu0
        %v720 = vpop.f32.mrf.mxu0
        %v721 = vadd.f32 %v577, %v720
        %v722 = vpop.f32.mrf.mxu0
        %723 = vdwg.mxu0
        %vm724 = vcmp.gt.f32.partialorder %v662, 0.0
        %vm725 = vcmp.gt.f32.partialorder %v665, 0.0
        %vm726 = vcmp.gt.f32.partialorder %v670, 0.0
        %vm727 = vcmp.gt.f32.partialorder %v673, 0.0
        %vm728 = vcmp.gt.f32.partialorder %v678, 0.0
        %vm729 = vcmp.gt.f32.partialorder %v681, 0.0
        %vm730 = vcmp.gt.f32.partialorder %v686, 0.0
        %vm731 = vcmp.gt.f32.partialorder %v689, 0.0
        %vm732 = vcmp.gt.f32.partialorder %v694, 0.0
        %vm733 = vcmp.gt.f32.partialorder %v697, 0.0
        %vm734 = vcmp.gt.f32.partialorder %v702, 0.0
        %vm735 = vcmp.gt.f32.partialorder %v705, 0.0
        %vm736 = vcmp.gt.f32.partialorder %v710, 0.0
        %vm737 = vcmp.gt.f32.partialorder %v713, 0.0
        %vm738 = vcmp.gt.f32.partialorder %v718, 0.0
        %vm739 = vcmp.gt.f32.partialorder %v721, 0.0
        %v740 = vld [vmem:[%s285] sm:$0x1]
        %v742 = vlaneseq
        %v743 = vshrl.u32 %v742, 7
        %v744 = vsub.s32 0, %v743
        %v745 = vrot.slane %v740, %v744
        %v747 = vmul.f32 %v745, %v662
        %v748 = vmul.f32 %v745, %v665
        %v749 = vmul.f32 %v745, %v670
        %v750 = vmul.f32 %v745, %v673
        %v751 = vmul.f32 %v745, %v678
        %v752 = vmul.f32 %v745, %v681
        %v753 = vmul.f32 %v745, %v686
        %v754 = vmul.f32 %v745, %v689
        %v755 = vmul.f32 %v745, %v694
        %v756 = vmul.f32 %v745, %v697
        %v757 = vmul.f32 %v745, %v702
        %v758 = vmul.f32 %v745, %v705
        %v759 = vmul.f32 %v745, %v710
        %v760 = vmul.f32 %v745, %v713
        %v761 = vmul.f32 %v745, %v718
        %v762 = vmul.f32 %v745, %v721
        %v763 = vsel %vm724, %v662, %v747
        %v764 = vsel %vm725, %v665, %v748
        %v765 = vsel %vm726, %v670, %v749
        %v766 = vsel %vm727, %v673, %v750
        %v767 = vsel %vm728, %v678, %v751
        %v768 = vsel %vm729, %v681, %v752
        %v769 = vsel %vm730, %v686, %v753
        %v770 = vsel %vm731, %v689, %v754
        %v771 = vsel %vm732, %v694, %v755
        %v772 = vsel %vm733, %v697, %v756
        %v773 = vsel %vm734, %v702, %v757
        %v774 = vsel %vm735, %v705, %v758
        %v775 = vsel %vm736, %v710, %v759
        %v776 = vsel %vm737, %v713, %v760
        %v777 = vsel %vm738, %v718, %v761
        %v778 = vsel %vm739, %v721, %v762
        %v779 = vpack.c.bf16 %v764, %v763
        %v780 = vpack.c.bf16 %v766, %v765
        %v781 = vpack.c.bf16 %v768, %v767
        %v782 = vpack.c.bf16 %v770, %v769
        %v783 = vpack.c.bf16 %v772, %v771
        %v784 = vpack.c.bf16 %v774, %v773
        %v785 = vpack.c.bf16 %v776, %v775
        %v786 = vpack.c.bf16 %v778, %v777
        %v795 = vunpack.c.l.b16 %v779
        %v796 = vunpack.c.h.b16 %v779
        %v797 = vunpack.c.l.b16 %v780
        %v798 = vunpack.c.h.b16 %v780
        %v799 = vunpack.c.l.b16 %v781
        %v800 = vunpack.c.h.b16 %v781
        %v801 = vunpack.c.l.b16 %v782
        %v802 = vunpack.c.h.b16 %v782
        %v803 = vunpack.c.l.b16 %v783
        %v804 = vunpack.c.h.b16 %v783
        %v805 = vunpack.c.l.b16 %v784
        %v806 = vunpack.c.h.b16 %v784
        %v807 = vunpack.c.l.b16 %v785
        %v808 = vunpack.c.h.b16 %v785
        %v809 = vunpack.c.l.b16 %v786
        %v810 = vunpack.c.h.b16 %v786
        %v811 = vpack.c.b16 %v795, %v795
        %v812 = vpack.c.b16 %v796, %v796
        %v813 = vpack.c.b16 %v797, %v797
        %v814 = vpack.c.b16 %v798, %v798
        %v815 = vpack.c.b16 %v799, %v799
        %v816 = vpack.c.b16 %v800, %v800
        %v817 = vpack.c.b16 %v801, %v801
        %v818 = vpack.c.b16 %v802, %v802
        %v819 = vpack.c.b16 %v803, %v803
        %v820 = vpack.c.b16 %v804, %v804
        %v821 = vpack.c.b16 %v805, %v805
        %v822 = vpack.c.b16 %v806, %v806
        %v823 = vpack.c.b16 %v807, %v807
        %v824 = vpack.c.b16 %v808, %v808
        %v825 = vpack.c.b16 %v809, %v809
        %v826 = vpack.c.b16 %v810, %v810
        %843 = vst [vmem:[#allocation2] sm:$0xf] %v811
        %844 = vst [vmem:[#allocation2 + $0x4] sm:$0xf] %v812
        %845 = vst [vmem:[#allocation2 + $0x8] sm:$0xf] %v813
        %846 = vst [vmem:[#allocation2 + $0xc] sm:$0xf] %v814
        %847 = vst [vmem:[#allocation2 + $0x10] sm:$0xf] %v815
        %848 = vst [vmem:[#allocation2 + $0x14] sm:$0xf] %v816
        %849 = vst [vmem:[#allocation2 + $0x18] sm:$0xf] %v817
        %850 = vst [vmem:[#allocation2 + $0x1c] sm:$0xf] %v818
        %851 = vst [vmem:[#allocation2 + $0x20] sm:$0xf] %v819
        %852 = vst [vmem:[#allocation2 + $0x24] sm:$0xf] %v820
        %853 = vst [vmem:[#allocation2 + $0x28] sm:$0xf] %v821
        %854 = vst [vmem:[#allocation2 + $0x2c] sm:$0xf] %v822
        %855 = vst [vmem:[#allocation2 + $0x30] sm:$0xf] %v823
        %856 = vst [vmem:[#allocation2 + $0x34] sm:$0xf] %v824
        %857 = vst [vmem:[#allocation2 + $0x38] sm:$0xf] %v825
        %858 = vst [vmem:[#allocation2 + $0x3c] sm:$0xf] %v826
        %p859 = scmp.eq.s32.totalorder %s19, 1
        // Predicated region
        $region57: #{tpu_custom_call.1} parent=39 // pred_check
          %p860 = pneg %p859
        $region58: #{tpu_custom_call.1} parent=39 // pred_check_branch
          %862 = sbr.rel (%p860) target = $region60
        $region59: #{tpu_custom_call.1} parent=39 // pred_region
          %863 = vst [vmem:[#allocation9] sm:$0xff] %v763
          %864 = vst [vmem:[#allocation9 + $0x8] sm:$0xff] %v764
          %865 = vst [vmem:[#allocation9 + $0x10] sm:$0xff] %v765
          %866 = vst [vmem:[#allocation9 + $0x18] sm:$0xff] %v766
          %867 = vst [vmem:[#allocation9 + $0x20] sm:$0xff] %v767
          %868 = vst [vmem:[#allocation9 + $0x28] sm:$0xff] %v768
          %869 = vst [vmem:[#allocation9 + $0x30] sm:$0xff] %v769
          %870 = vst [vmem:[#allocation9 + $0x38] sm:$0xff] %v770
          %871 = vst [vmem:[#allocation9 + $0x40] sm:$0xff] %v771
          %872 = vst [vmem:[#allocation9 + $0x48] sm:$0xff] %v772
          %873 = vst [vmem:[#allocation9 + $0x50] sm:$0xff] %v773
          %874 = vst [vmem:[#allocation9 + $0x58] sm:$0xff] %v774
          %875 = vst [vmem:[#allocation9 + $0x60] sm:$0xff] %v775
          %876 = vst [vmem:[#allocation9 + $0x68] sm:$0xff] %v776
          %877 = vst [vmem:[#allocation9 + $0x70] sm:$0xff] %v777
          %878 = vst [vmem:[#allocation9 + $0x78] sm:$0xff] %v778
        $region60: #{tpu_custom_call.1} parent=39 // pred_fallthru
          _
        // Predicated region
        $region61: #{tpu_custom_call.1} parent=39 // pred_check
          %p879 = pneg %p152
        $region62: #{tpu_custom_call.1} parent=39 // pred_check_branch
          %881 = sbr.rel (%p879) target = $region64
        $region63: #{tpu_custom_call.1} parent=39 // pred_region
          %s883 = ssub.s32 2048, 2048
          %884 = vsyncadd [#allocation5], %s883
          %s885 = sshll.u32 [#allocation9], 4
          %s886 = int_to_ptr.vmem [resolvable:$true] %s885
          %891 = dma.vmem_to_hbm [thread:$0]  %s886, 2048, %s5, [#allocation5], 128, 128, 8
        $region64: #{tpu_custom_call.1} parent=39 // pred_fallthru
          _
        // Predicated region
        $region65: #{tpu_custom_call.1} parent=39 // pred_check
          %p892 = pneg %p152
        $region66: #{tpu_custom_call.1} parent=39 // pred_check_branch
          %894 = sbr.rel (%p892) target = $region68
        $region67: #{tpu_custom_call.1} parent=39 // pred_region
          %895 = dma.done [#allocation5], 2048
        $region68: #{tpu_custom_call.1} parent=39 // pred_fallthru
          _
      $region40: #{tpu_custom_call.1} parent=5 // pred_fallthru
        _
      %p896 = scmp.le.s32.totalorder 2, %s14
      // Predicated region
      $region69: #{tpu_custom_call.1} parent=5 // pred_check
        %p897 = pneg %p896
      $region70: #{tpu_custom_call.1} parent=5 // pred_check_branch
        %899 = sbr.rel (%p897) target = $region72
      $region71: #{tpu_custom_call.1} parent=5 // pred_region
        %s900 = ssub.s32 %s14, 2
      $region72: #{tpu_custom_call.1} parent=5 // pred_fallthru
        _
    $region6: #{tpu_custom_call.1} parent=1 // loop_footer
      %s18 = sadd.s32 1, %s14
    $region7: #{tpu_custom_call.1} parent=1 // loop_footer_branch
      %13 = sbr.rel target = $region3
    $region8: #{tpu_custom_call.1} parent=1 // loop_exit
      _
    %901 = vsyncpa [#allocation4], 1
    %s902 = scalar_lea.sflag [#allocation4], 1
    %903 = vsyncpa %s902, 1
    %904 = vsyncpa [#allocation7], 1
    %905 = vsyncpa [#allocation5], 1
    %s906 = scalar_lea.sflag [#allocation5], 1
    %907 = vsyncpa %s906, 1

// kernel: tpu_custom_call.1
$region0: #{tpu_custom_call.1}
  #allocation0 [shape = 'u32[]', space=smem, size = 0x4, offset = 0x4, fixed_abs, tag = 'smem constant byte address 0x4 - core index']
  #allocation1 [shape = 'u32[144,128]{1,0:T(1,128)}', space=vmem, size = 0x12000, scoped, tag = 'internal scratch']
  #allocation2 [shape = 'bf16[128,128]{1,0:T(8,128)(2,1)}', space=vmem, size = 0x8000, scoped, tag = 'scratch operand']
  %s0 = inlined_call_operand.hbm [shape: bf16[128,128], index: 0, kind: input, shape index: {}]
  %s1 = inlined_call_operand.hbm [shape: bf16[128,128], index: 1, kind: input, shape index: {}]
  %s2 = inlined_call_operand.hbm [shape: bf16[2,128,128], index: 2, kind: input, shape index: {}]
  %s3 = inlined_call_operand.vmem [shape: f32[2,1,128], index: 3, kind: input, shape index: {}]
  %s4 = inlined_call_operand.vmem [shape: f32[2,1,128], index: 4, kind: input, shape index: {}]
  %s5 = inlined_call_operand.hbm [shape: f32[128,128], index: 5, kind: output, shape index: {}]
  %s6 = sld [smem:[#allocation0]]
  $region73: #{tpu_custom_call.1} parent=0
    _
  %s8 = ssub.s32 1, %s6
  %s9 = scalar_select 0, %s8, %s6
  $region1: #{tpu_custom_call.1} parent=0
    #allocation3 [shape = 'u8[32768]{0}', space=vmem, size = 0x8000, scoped, tag = 'input window, operand 0, single buffered']
    #allocation4 [shape = 's32[2]{0}', space=sflag, size = 0x8, scoped, tag = 'scoped memory for tpu_custom_call.1']
    #allocation5 [shape = 's32[2]{0}', space=sflag, size = 0x8, scoped, tag = 'scoped memory for tpu_custom_call.1']
    #allocation6 [shape = 'u8[32768]{0}', space=vmem, size = 0x8000, scoped, tag = 'input window, operand 1, single buffered']
    #allocation7 [shape = 's32[1]{0}', space=sflag, size = 0x4, scoped, tag = 'scoped memory for tpu_custom_call.1']
    #allocation8 [shape = 'u8[65536]{0}', space=vmem, size = 0x10000, scoped, tag = 'input window, operand 2']
    #allocation9 [shape = 'u8[65536]{0}', space=vmem, size = 0x10000, scoped, tag = 'output window, operand 0, single buffered']
    %10 = vsyncpa [#allocation4], 0
    %11 = vsyncpa [#allocation7], 0
    %12 = vsyncpa [#allocation5], 0
    loop: start=0, step=1, limit=4
    $region2: #{tpu_custom_call.1} parent=1 // loop_pre_header
      _
    $region3: #{tpu_custom_call.1} parent=1 // loop_header
      %s14 = sphi 0, %s18
      %p15 = scmp.ge.s32.totalorder %s14, 4
      %s22 = sphi 0, %s22
      %s24 = sphi 0, %s22
      %s25 = sphi 0, %s24
      %s39 = sphi 0, %s25
      %s43 = sphi 0, %s43
      %s45 = sphi 0, %s43
      %s46 = sphi 0, %s45
      %s60 = sphi 0, %s46
      %s66 = sphi 0, %s68
      %s69 = sphi 0, %s66
      %s70 = sphi 0, %s69
      %s86 = sphi 0, %s70
      %s92 = sphi 0, %s94
      %s95 = sphi 0, %s92
      %s96 = sphi 0, %s95
      %s112 = sphi 0, %s96
      %s118 = sphi 0, %s120
      %s121 = sphi 0, %s118
      %s122 = sphi 0, %s121
      %s138 = sphi 0, %s122
      %s142 = sphi 0, %s142
      %s144 = sphi 0, %s142
      %s145 = sphi 0, %s144
      %s159 = sphi 0, %s145
    $region4: #{tpu_custom_call.1} parent=1 // loop_header_branch
      %17 = sbr.rel (%p15) target = $region8
    $region5: #{tpu_custom_call.1} parent=1 // loop_body
      %s19 = ssub.s32 %s14, 1
      %s20 = ssub.s32 %s14, 2
      %s21 = sadd.s32 %s14, 1
      %s23 = sadd.s32 %s22, 1
      %p26 = scmp.eq.s32.totalorder %s14, 1
      %p27 = scmp.ne.s32.totalorder %s22, %s24
      %p28 = scmp.eq.s32.totalorder %s14, 0
      %p29 = por %p27, %p28
      %p30 = scmp.ne.s32.totalorder %s22, %s24
      %p31 = scmp.eq.s32.totalorder %s19, 1
      %p32 = por %p30, %p31
      %p33 = scmp.ne.s32.totalorder %s24, %s25
      %p34 = scmp.eq.s32.totalorder %s19, 0
      %p35 = por %p33, %p34
      %p36 = scmp.ne.s32.totalorder %s24, %s25
      %p37 = scmp.eq.s32.totalorder %s20, 1
      %p38 = por %p36, %p37
      %p40 = scmp.ne.s32.totalorder %s25, %s39
      %p41 = scmp.eq.s32.totalorder %s20, 0
      %p42 = por %p40, %p41
      %s44 = sadd.s32 %s43, 1
      %p47 = scmp.eq.s32.totalorder %s14, 1
      %p48 = scmp.ne.s32.totalorder %s43, %s45
      %p49 = scmp.eq.s32.totalorder %s14, 0
      %p50 = por %p48, %p49
      %p51 = scmp.ne.s32.totalorder %s43, %s45
      %p52 = scmp.eq.s32.totalorder %s19, 1
      %p53 = por %p51, %p52
      %p54 = scmp.ne.s32.totalorder %s45, %s46
      %p55 = scmp.eq.s32.totalorder %s19, 0
      %p56 = por %p54, %p55
      %p57 = scmp.ne.s32.totalorder %s45, %s46
      %p58 = scmp.eq.s32.totalorder %s20, 1
      %p59 = por %p57, %p58
      %p61 = scmp.ne.s32.totalorder %s46, %s60
      %p62 = scmp.eq.s32.totalorder %s20, 0
      %p63 = por %p61, %p62
      %s64 = ssub.s32 %s14, %s21
      %p65 = scmp.eq.s32.totalorder %s64, 0
      %s67 = sadd.s32 %s66, 1
      %s68 = scalar_select %p65, %s66, %s67
      %p71 = pneg %p65
      %p72 = scmp.eq.s32.totalorder %s14, 1
      %p73 = por %p71, %p72
      %p74 = scmp.ne.s32.totalorder %s66, %s69
      %p75 = scmp.eq.s32.totalorder %s14, 0
      %p76 = por %p74, %p75
      %p77 = scmp.ne.s32.totalorder %s66, %s69
      %p78 = scmp.eq.s32.totalorder %s19, 1
      %p79 = por %p77, %p78
      %p80 = scmp.ne.s32.totalorder %s69, %s70
      %p81 = scmp.eq.s32.totalorder %s19, 0
      %p82 = por %p80, %p81
      %p83 = scmp.ne.s32.totalorder %s69, %s70
      %p84 = scmp.eq.s32.totalorder %s20, 1
      %p85 = por %p83, %p84
      %p87 = scmp.ne.s32.totalorder %s70, %s86
      %p88 = scmp.eq.s32.totalorder %s20, 0
      %p89 = por %p87, %p88
      %s90 = ssub.s32 %s14, %s21
      %p91 = scmp.eq.s32.totalorder %s90, 0
      %s93 = sadd.s32 %s92, 1
      %s94 = scalar_select %p91, %s92, %s93
      %p97 = pneg %p91
      %p98 = scmp.eq.s32.totalorder %s14, 1
      %p99 = por %p97, %p98
      %p100 = scmp.ne.s32.totalorder %s92, %s95
      %p101 = scmp.eq.s32.totalorder %s14, 0
      %p102 = por %p100, %p101
      %p103 = scmp.ne.s32.totalorder %s92, %s95
      %p104 = scmp.eq.s32.totalorder %s19, 1
      %p105 = por %p103, %p104
      %p106 = scmp.ne.s32.totalorder %s95, %s96
      %p107 = scmp.eq.s32.totalorder %s19, 0
      %p108 = por %p106, %p107
      %p109 = scmp.ne.s32.totalorder %s95, %s96
      %p110 = scmp.eq.s32.totalorder %s20, 1
      %p111 = por %p109, %p110
      %p113 = scmp.ne.s32.totalorder %s96, %s112
      %p114 = scmp.eq.s32.totalorder %s20, 0
      %p115 = por %p113, %p114
      %s116 = ssub.s32 %s14, %s21
      %p117 = scmp.eq.s32.totalorder %s116, 0
      %s119 = sadd.s32 %s118, 1
      %s120 = scalar_select %p117, %s118, %s119
      %p123 = pneg %p117
      %p124 = scmp.eq.s32.totalorder %s14, 1
      %p125 = por %p123, %p124
      %p126 = scmp.ne.s32.totalorder %s118, %s121
      %p127 = scmp.eq.s32.totalorder %s14, 0
      %p128 = por %p126, %p127
      %p129 = scmp.ne.s32.totalorder %s118, %s121
      %p130 = scmp.eq.s32.totalorder %s19, 1
      %p131 = por %p129, %p130
      %p132 = scmp.ne.s32.totalorder %s121, %s122
      %p133 = scmp.eq.s32.totalorder %s19, 0
      %p134 = por %p132, %p133
      %p135 = scmp.ne.s32.totalorder %s121, %s122
      %p136 = scmp.eq.s32.totalorder %s20, 1
      %p137 = por %p135, %p136
      %p139 = scmp.ne.s32.totalorder %s122, %s138
      %p140 = scmp.eq.s32.totalorder %s20, 0
      %p141 = por %p139, %p140
      %s143 = sadd.s32 %s142, 1
      %p146 = scmp.eq.s32.totalorder %s14, 1
      %p147 = scmp.ne.s32.totalorder %s142, %s144
      %p148 = scmp.eq.s32.totalorder %s14, 0
      %p149 = por %p147, %p148
      %p150 = scmp.ne.s32.totalorder %s142, %s144
      %p151 = scmp.eq.s32.totalorder %s19, 1
      %p152 = por %p150, %p151
      %p153 = scmp.ne.s32.totalorder %s144, %s145
      %p154 = scmp.eq.s32.totalorder %s19, 0
      %p155 = por %p153, %p154
      %p156 = scmp.ne.s32.totalorder %s144, %s145
      %p157 = scmp.eq.s32.totalorder %s20, 1
      %p158 = por %p156, %p157
      %p160 = scmp.ne.s32.totalorder %s145, %s159
      %p161 = scmp.eq.s32.totalorder %s20, 0
      %p162 = por %p160, %p161
      %p163 = scmp.le.s32.totalorder 1, %s14
      %p164 = scmp.lt.s32.totalorder %s14, 3
      %p165 = pnand %p163, %p164
      %p166 = pneg %p165
      // Predicated region
      $region9: #{tpu_custom_call.1} parent=5 // pred_check
        _
      $region10: #{tpu_custom_call.1} parent=5 // pred_check_branch
        %168 = sbr.rel (%p165) target = $region12
      $region11: #{tpu_custom_call.1} parent=5 // pred_region
        %s169 = ssub.s32 %s14, 1
        // Predicated region
        $region13: #{tpu_custom_call.1} parent=11 // pred_check
          %p170 = pneg %p35
        $region14: #{tpu_custom_call.1} parent=11 // pred_check_branch
          %172 = sbr.rel (%p170) target = $region16
        $region15: #{tpu_custom_call.1} parent=11 // pred_region
          %s174 = ssub.s32 1024, 1024
          %175 = vsyncadd [#allocation4], %s174
          %s176 = sshll.u32 [#allocation3], 4
          %s177 = int_to_ptr.vmem [resolvable:$true] %s176
          %182 = dma.hbm_to_vmem [thread:$0]  %s0, 1024, %s177, [#allocation4], 64, 64, 4
        $region16: #{tpu_custom_call.1} parent=11 // pred_fallthru
          _
        // Predicated region
        $region17: #{tpu_custom_call.1} parent=11 // pred_check
          %p183 = pneg %p56
        $region18: #{tpu_custom_call.1} parent=11 // pred_check_branch
          %185 = sbr.rel (%p183) target = $region20
        $region19: #{tpu_custom_call.1} parent=11 // pred_region
          %s187 = ssub.s32 1024, 1024
          %188 = vsyncadd [#allocation7], %s187
          %s189 = sshll.u32 [#allocation6], 4
          %s190 = int_to_ptr.vmem [resolvable:$true] %s189
          %195 = dma.hbm_to_vmem [thread:$0]  %s1, 1024, %s190, [#allocation7], 64, 64, 4
        $region20: #{tpu_custom_call.1} parent=11 // pred_fallthru
          _
      $region12: #{tpu_custom_call.1} parent=5 // pred_fallthru
        _
      %p196 = scmp.lt.s32.totalorder %s14, 2
      // Predicated region
      $region21: #{tpu_custom_call.1} parent=5 // pred_check
        %p197 = pneg %p196
      $region22: #{tpu_custom_call.1} parent=5 // pred_check_branch
        %199 = sbr.rel (%p197) target = $region24
      $region23: #{tpu_custom_call.1} parent=5 // pred_region
        // Predicated region
        $region25: #{tpu_custom_call.1} parent=23 // pred_check
          %p200 = pneg %p76
        $region26: #{tpu_custom_call.1} parent=23 // pred_check_branch
          %202 = sbr.rel (%p200) target = $region28
        $region27: #{tpu_custom_call.1} parent=23 // pred_region
          %s203 = sand.u32 %s14, 1
          %s204 = scalar_lea.sflag [#allocation4], %s203
          %s205 = sand.u32 %s66, 1
          %s206 = smul.addr %s205, 64
          %s207 = scalar_lea.vmem [#allocation8], %s206
          %s209 = ssub.s32 1024, 1024
          %210 = vsyncadd %s204, %s209
          %s211 = smul.addr %s14, 16
          %s212 = smul.addr %s211, 64
          %s213 = scalar_lea.hbm %s2, %s212
          %s214 = sshll.u32 %s207, 4
          %s215 = int_to_ptr.vmem [resolvable:$true] %s214
          %220 = dma.hbm_to_vmem [thread:$0]  %s213, 1024, %s215, %s204, 64, 64, 4
        $region28: #{tpu_custom_call.1} parent=23 // pred_fallthru
          _
        // Predicated region
        $region29: #{tpu_custom_call.1} parent=23 // pred_check
          %p221 = pneg %p102
        $region30: #{tpu_custom_call.1} parent=23 // pred_check_branch
          %223 = sbr.rel (%p221) target = $region32
        $region31: #{tpu_custom_call.1} parent=23 // pred_region
          %p224 = scmp.lt.s32.totalorder %s14, 1
          %s225 = scalar_select %p224, %s14, 1
          %s226 = scalar_lea.vmem %s3, %s225
        $region32: #{tpu_custom_call.1} parent=23 // pred_fallthru
          _
        // Predicated region
        $region33: #{tpu_custom_call.1} parent=23 // pred_check
          %p227 = pneg %p128
        $region34: #{tpu_custom_call.1} parent=23 // pred_check_branch
          %229 = sbr.rel (%p227) target = $region36
        $region35: #{tpu_custom_call.1} parent=23 // pred_region
          %p230 = scmp.lt.s32.totalorder %s14, 1
          %s231 = scalar_select %p230, %s14, 1
          %s232 = scalar_lea.vmem %s4, %s231
        $region36: #{tpu_custom_call.1} parent=23 // pred_fallthru
          _
      $region24: #{tpu_custom_call.1} parent=5 // pred_fallthru
        _
      %p233 = scmp.le.s32.totalorder 1, %s14
      %p234 = scmp.lt.s32.totalorder %s14, 3
      %p235 = pnand %p233, %p234
      %p236 = pneg %p235
      // Predicated region
      $region37: #{tpu_custom_call.1} parent=5 // pred_check
        _
      $region38: #{tpu_custom_call.1} parent=5 // pred_check_branch
        %238 = sbr.rel (%p235) target = $region40
      $region39: #{tpu_custom_call.1} parent=5 // pred_region
        %s239 = ssub.s32 %s14, 1
        // Predicated region
        $region41: #{tpu_custom_call.1} parent=39 // pred_check
          %p240 = pneg %p35
        $region42: #{tpu_custom_call.1} parent=39 // pred_check_branch
          %242 = sbr.rel (%p240) target = $region44
        $region43: #{tpu_custom_call.1} parent=39 // pred_region
          %243 = dma.done [#allocation4], 1024
        $region44: #{tpu_custom_call.1} parent=39 // pred_fallthru
          _
        // Predicated region
        $region45: #{tpu_custom_call.1} parent=39 // pred_check
          %p244 = pneg %p56
        $region46: #{tpu_custom_call.1} parent=39 // pred_check_branch
          %246 = sbr.rel (%p244) target = $region48
        $region47: #{tpu_custom_call.1} parent=39 // pred_region
          %247 = dma.done [#allocation7], 1024
        $region48: #{tpu_custom_call.1} parent=39 // pred_fallthru
          _
        %s248 = sand.u32 %s19, 1
        %s249 = scalar_lea.sflag [#allocation4], %s248
        %s250 = sand.u32 %s69, 1
        %s251 = smul.addr %s250, 64
        %s252 = scalar_lea.vmem [#allocation8], %s251
        // Predicated region
        $region49: #{tpu_custom_call.1} parent=39 // pred_check
          %p253 = pneg %p82
        $region50: #{tpu_custom_call.1} parent=39 // pred_check_branch
          %255 = sbr.rel (%p253) target = $region52
        $region51: #{tpu_custom_call.1} parent=39 // pred_region
          %256 = dma.done %s249, 1024
        $region52: #{tpu_custom_call.1} parent=39 // pred_fallthru
          _
        %p257 = pneg %p35
        %p258 = pneg %p32
        %p259 = pneg %p56
        %p260 = pneg %p53
        %s261 = sand.u32 %s19, 1
        %s262 = scalar_lea.sflag [#allocation4], %s261
        %s263 = sand.u32 %s69, 1
        %s264 = smul.addr %s263, 64
        %s265 = scalar_lea.vmem [#allocation8], %s264
        %p266 = pneg %p82
        %p267 = pneg %p79
        %p268 = scmp.lt.s32.totalorder %s19, 1
        %s269 = scalar_select %p268, %s19, 1
        %s270 = scalar_lea.vmem %s3, %s269
        %p271 = pneg %p108
        %p272 = pneg %p105
        %p273 = scmp.lt.s32.totalorder %s19, 1
        %s274 = scalar_select %p273, %s19, 1
        %s275 = scalar_lea.vmem %s4, %s274
        %p276 = pneg %p134
        %p277 = pneg %p131
        %p278 = pneg %p155
        %p279 = pneg %p152
        %p280 = scmp.lt.s32.totalorder %s19, 1
        %s281 = scalar_select %p280, %s19, 1
        %s282 = scalar_lea.vmem %s3, %s281
        %p283 = scmp.lt.s32.totalorder %s19, 1
        %s284 = scalar_select %p283, %s19, 1
        %s285 = scalar_lea.vmem %s4, %s284
        %p287 = scmp.eq.s32.totalorder %s19, 0
        // Predicated region
        $region53: #{tpu_custom_call.1} parent=39 // pred_check
          %p288 = pneg %p287
        $region54: #{tpu_custom_call.1} parent=39 // pred_check_branch
          %290 = sbr.rel (%p288) target = $region56
        $region55: #{tpu_custom_call.1} parent=39 // pred_region
          %v291 = vld [vmem:[#allocation6] sm:$0xf]
          %v292 = vld [vmem:[#allocation6 + $0x4] sm:$0xf]
          %v293 = vld [vmem:[#allocation6 + $0x8] sm:$0xf]
          %v294 = vld [vmem:[#allocation6 + $0xc] sm:$0xf]
          %v295 = vld [vmem:[#allocation6 + $0x10] sm:$0xf]
          %v296 = vld [vmem:[#allocation6 + $0x14] sm:$0xf]
          %v297 = vld [vmem:[#allocation6 + $0x18] sm:$0xf]
          %v298 = vld [vmem:[#allocation6 + $0x1c] sm:$0xf]
          %v299 = vld [vmem:[#allocation6 + $0x20] sm:$0xf]
          %v300 = vld [vmem:[#allocation6 + $0x24] sm:$0xf]
          %v301 = vld [vmem:[#allocation6 + $0x28] sm:$0xf]
          %v302 = vld [vmem:[#allocation6 + $0x2c] sm:$0xf]
          %v303 = vld [vmem:[#allocation6 + $0x30] sm:$0xf]
          %v304 = vld [vmem:[#allocation6 + $0x34] sm:$0xf]
          %v305 = vld [vmem:[#allocation6 + $0x38] sm:$0xf]
          %v306 = vld [vmem:[#allocation6 + $0x3c] sm:$0xf]
          %307 = vst [vmem:[#allocation2] sm:$0xf] %v291
          %308 = vst [vmem:[#allocation2 + $0x4] sm:$0xf] %v292
          %309 = vst [vmem:[#allocation2 + $0x8] sm:$0xf] %v293
          %310 = vst [vmem:[#allocation2 + $0xc] sm:$0xf] %v294
          %311 = vst [vmem:[#allocation2 + $0x10] sm:$0xf] %v295
          %312 = vst [vmem:[#allocation2 + $0x14] sm:$0xf] %v296
          %313 = vst [vmem:[#allocation2 + $0x18] sm:$0xf] %v297
          %314 = vst [vmem:[#allocation2 + $0x1c] sm:$0xf] %v298
          %315 = vst [vmem:[#allocation2 + $0x20] sm:$0xf] %v299
          %316 = vst [vmem:[#allocation2 + $0x24] sm:$0xf] %v300
          %317 = vst [vmem:[#allocation2 + $0x28] sm:$0xf] %v301
          %318 = vst [vmem:[#allocation2 + $0x2c] sm:$0xf] %v302
          %319 = vst [vmem:[#allocation2 + $0x30] sm:$0xf] %v303
          %320 = vst [vmem:[#allocation2 + $0x34] sm:$0xf] %v304
          %321 = vst [vmem:[#allocation2 + $0x38] sm:$0xf] %v305
          %322 = vst [vmem:[#allocation2 + $0x3c] sm:$0xf] %v306
        $region56: #{tpu_custom_call.1} parent=39 // pred_fallthru
          _
        %v323 = vld [vmem:[#allocation3] sm:$0xf]
        %v324 = vld [vmem:[#allocation3 + $0x4] sm:$0xf]
        %v325 = vld [vmem:[#allocation3 + $0x8] sm:$0xf]
        %v326 = vld [vmem:[#allocation3 + $0xc] sm:$0xf]
        %v327 = vld [vmem:[#allocation3 + $0x10] sm:$0xf]
        %v328 = vld [vmem:[#allocation3 + $0x14] sm:$0xf]
        %v329 = vld [vmem:[#allocation3 + $0x18] sm:$0xf]
        %v330 = vld [vmem:[#allocation3 + $0x1c] sm:$0xf]
        %v331 = vld [vmem:[#allocation3 + $0x20] sm:$0xf]
        %v332 = vld [vmem:[#allocation3 + $0x24] sm:$0xf]
        %v333 = vld [vmem:[#allocation3 + $0x28] sm:$0xf]
        %v334 = vld [vmem:[#allocation3 + $0x2c] sm:$0xf]
        %v335 = vld [vmem:[#allocation3 + $0x30] sm:$0xf]
        %v336 = vld [vmem:[#allocation3 + $0x34] sm:$0xf]
        %v337 = vld [vmem:[#allocation3 + $0x38] sm:$0xf]
        %v338 = vld [vmem:[#allocation3 + $0x3c] sm:$0xf]
        %v339 = vld [vmem:[#allocation2] sm:$0xf]
        %v340 = vld [vmem:[#allocation2 + $0x4] sm:$0xf]
        %v341 = vld [vmem:[#allocation2 + $0x8] sm:$0xf]
        %v342 = vld [vmem:[#allocation2 + $0xc] sm:$0xf]
        %v343 = vld [vmem:[#allocation2 + $0x10] sm:$0xf]
        %v344 = vld [vmem:[#allocation2 + $0x14] sm:$0xf]
        %v345 = vld [vmem:[#allocation2 + $0x18] sm:$0xf]
        %v346 = vld [vmem:[#allocation2 + $0x1c] sm:$0xf]
        %v347 = vld [vmem:[#allocation2 + $0x20] sm:$0xf]
        %v348 = vld [vmem:[#allocation2 + $0x24] sm:$0xf]
        %v349 = vld [vmem:[#allocation2 + $0x28] sm:$0xf]
        %v350 = vld [vmem:[#allocation2 + $0x2c] sm:$0xf]
        %v351 = vld [vmem:[#allocation2 + $0x30] sm:$0xf]
        %v352 = vld [vmem:[#allocation2 + $0x34] sm:$0xf]
        %v353 = vld [vmem:[#allocation2 + $0x38] sm:$0xf]
        %v354 = vld [vmem:[#allocation2 + $0x3c] sm:$0xf]
        %v371 = vunpack.c.l.b16 %v323
        %v372 = vunpack.c.l.b16 %v324
        %v373 = vunpack.c.l.b16 %v325
        %v374 = vunpack.c.l.b16 %v326
        %v375 = vunpack.c.l.b16 %v327
        %v376 = vunpack.c.l.b16 %v328
        %v377 = vunpack.c.l.b16 %v329
        %v378 = vunpack.c.l.b16 %v330
        %v379 = vunpack.c.l.b16 %v331
        %v380 = vunpack.c.l.b16 %v332
        %v381 = vunpack.c.l.b16 %v333
        %v382 = vunpack.c.l.b16 %v334
        %v383 = vunpack.c.l.b16 %v335
        %v384 = vunpack.c.l.b16 %v336
        %v385 = vunpack.c.l.b16 %v337
        %v386 = vunpack.c.l.b16 %v338
        %v387 = vpack.c.b16 %v372, %v371
        %v388 = vpack.c.b16 %v374, %v373
        %v389 = vpack.c.b16 %v376, %v375
        %v390 = vpack.c.b16 %v378, %v377
        %v391 = vpack.c.b16 %v380, %v379
        %v392 = vpack.c.b16 %v382, %v381
        %v393 = vpack.c.b16 %v384, %v383
        %v394 = vpack.c.b16 %v386, %v385
        %v419 = vunpack.c.l.b16 %v339
        %v420 = vunpack.c.l.b16 %v340
        %v421 = vunpack.c.l.b16 %v341
        %v422 = vunpack.c.l.b16 %v342
        %v423 = vunpack.c.l.b16 %v343
        %v424 = vunpack.c.l.b16 %v344
        %v425 = vunpack.c.l.b16 %v345
        %v426 = vunpack.c.l.b16 %v346
        %v427 = vunpack.c.l.b16 %v347
        %v428 = vunpack.c.l.b16 %v348
        %v429 = vunpack.c.l.b16 %v349
        %v430 = vunpack.c.l.b16 %v350
        %v431 = vunpack.c.l.b16 %v351
        %v432 = vunpack.c.l.b16 %v352
        %v433 = vunpack.c.l.b16 %v353
        %v434 = vunpack.c.l.b16 %v354
        %v435 = vpack.c.b16 %v420, %v419
        %v436 = vpack.c.b16 %v422, %v421
        %v437 = vpack.c.b16 %v424, %v423
        %v438 = vpack.c.b16 %v426, %v425
        %v439 = vpack.c.b16 %v428, %v427
        %v440 = vpack.c.b16 %v430, %v429
        %v441 = vpack.c.b16 %v432, %v431
        %v442 = vpack.c.b16 %v434, %v433
        %451 = vmatprep.subr.bf16.mxu0 0
        %452 = vmatpush1.bf16.msra.mxu0 %v442
        %453 = vmatprep.subr.bf16.mxu0 0
        %454 = vmatpush1.bf16.msra.mxu0 %v441
        %455 = vmatprep.subr.bf16.mxu0 0
        %456 = vmatpush1.bf16.msra.mxu0 %v440
        %457 = vmatprep.subr.bf16.mxu0 0
        %458 = vmatpush1.bf16.msra.mxu0 %v439
        %459 = vmatprep.subr.bf16.mxu0 0
        %460 = vmatpush1.bf16.msra.mxu0 %v438
        %461 = vmatprep.subr.bf16.mxu0 0
        %462 = vmatpush1.bf16.msra.mxu0 %v437
        %463 = vmatprep.subr.bf16.mxu0 0
        %464 = vmatpush1.bf16.msra.mxu0 %v436
        %465 = vmatprep.subr.bf16.mxu0 0
        %466 = vmatpush1.bf16.msra.mxu0 %v435
        %467 = vmatprep.subr.bf16.mxu0 0
        %468 = vmatpush2.bf16.msra.mxu0 0
        %469 = vmatprep.subr.bf16.mxu0 0
        %470 = vmatpush2.bf16.msra.mxu0 0
        %471 = vmatprep.subr.bf16.mxu0 0
        %472 = vmatpush2.bf16.msra.mxu0 0
        %473 = vmatprep.subr.bf16.mxu0 0
        %474 = vmatpush2.bf16.msra.mxu0 0
        %475 = vmatprep.subr.bf16.mxu0 0
        %476 = vmatpush2.bf16.msra.mxu0 0
        %477 = vmatprep.subr.bf16.mxu0 0
        %478 = vmatpush2.bf16.msra.mxu0 0
        %479 = vmatprep.subr.bf16.mxu0 0
        %480 = vmatpush2.bf16.msra.mxu0 0
        %481 = vmatprep.subr.bf16.mxu0 0
        %482 = vmatpush2.bf16.msra.mxu0 0
        %483 = vmatprep.mubr.bf16.mxu0 0
        %484 = vmatmul.mubr.bf16.gmra.mxu0 %v387
        %v485 = vpop.f32.mrf.mxu0
        %v486 = vadd.f32 0.0, %v485
        %v487 = vpop.f32.mrf.mxu0
        %v488 = vpop.f32.mrf.mxu0
        %v489 = vadd.f32 0.0, %v488
        %v490 = vpop.f32.mrf.mxu0
        %491 = vmatprep.mubr.bf16.mxu0 0
        %492 = vmatmul.mubr.bf16.gmra.mxu0 %v388
        %v493 = vpop.f32.mrf.mxu0
        %v494 = vadd.f32 0.0, %v493
        %v495 = vpop.f32.mrf.mxu0
        %v496 = vpop.f32.mrf.mxu0
        %v497 = vadd.f32 0.0, %v496
        %v498 = vpop.f32.mrf.mxu0
        %499 = vmatprep.mubr.bf16.mxu0 0
        %500 = vmatmul.mubr.bf16.gmra.mxu0 %v389
        %v501 = vpop.f32.mrf.mxu0
        %v502 = vadd.f32 0.0, %v501
        %v503 = vpop.f32.mrf.mxu0
        %v504 = vpop.f32.mrf.mxu0
        %v505 = vadd.f32 0.0, %v504
        %v506 = vpop.f32.mrf.mxu0
        %507 = vmatprep.mubr.bf16.mxu0 0
        %508 = vmatmul.mubr.bf16.gmra.mxu0 %v390
        %v509 = vpop.f32.mrf.mxu0
        %v510 = vadd.f32 0.0, %v509
        %v511 = vpop.f32.mrf.mxu0
        %v512 = vpop.f32.mrf.mxu0
        %v513 = vadd.f32 0.0, %v512
        %v514 = vpop.f32.mrf.mxu0
        %515 = vmatprep.mubr.bf16.mxu0 0
        %516 = vmatmul.mubr.bf16.gmra.mxu0 %v391
        %v517 = vpop.f32.mrf.mxu0
        %v518 = vadd.f32 0.0, %v517
        %v519 = vpop.f32.mrf.mxu0
        %v520 = vpop.f32.mrf.mxu0
        %v521 = vadd.f32 0.0, %v520
        %v522 = vpop.f32.mrf.mxu0
        %523 = vmatprep.mubr.bf16.mxu0 0
        %524 = vmatmul.mubr.bf16.gmra.mxu0 %v392
        %v525 = vpop.f32.mrf.mxu0
        %v526 = vadd.f32 0.0, %v525
        %v527 = vpop.f32.mrf.mxu0
        %v528 = vpop.f32.mrf.mxu0
        %v529 = vadd.f32 0.0, %v528
        %v530 = vpop.f32.mrf.mxu0
        %531 = vmatprep.mubr.bf16.mxu0 0
        %532 = vmatmul.mubr.bf16.gmra.mxu0 %v393
        %v533 = vpop.f32.mrf.mxu0
        %v534 = vadd.f32 0.0, %v533
        %v535 = vpop.f32.mrf.mxu0
        %v536 = vpop.f32.mrf.mxu0
        %v537 = vadd.f32 0.0, %v536
        %v538 = vpop.f32.mrf.mxu0
        %539 = vmatprep.mubr.bf16.mxu0 0
        %540 = vmatmul.mubr.bf16.gmra.mxu0 %v394
        %v541 = vpop.f32.mrf.mxu0
        %v542 = vadd.f32 0.0, %v541
        %v543 = vpop.f32.mrf.mxu0
        %v544 = vpop.f32.mrf.mxu0
        %v545 = vadd.f32 0.0, %v544
        %v546 = vpop.f32.mrf.mxu0
        %547 = vdwg.mxu0
        %v548 = vpack.c.bf16 %v489, %v486
        %v549 = vpack.c.bf16 %v497, %v494
        %v550 = vpack.c.bf16 %v505, %v502
        %v551 = vpack.c.bf16 %v513, %v510
        %v552 = vpack.c.bf16 %v521, %v518
        %v553 = vpack.c.bf16 %v529, %v526
        %v554 = vpack.c.bf16 %v537, %v534
        %v555 = vpack.c.bf16 %v545, %v542
        %v556 = vld [vmem:[%s252] sm:$0xf]
        %v557 = vld [vmem:[%s252 + $0x4] sm:$0xf]
        %v558 = vld [vmem:[%s252 + $0x8] sm:$0xf]
        %v559 = vld [vmem:[%s252 + $0xc] sm:$0xf]
        %v560 = vld [vmem:[%s252 + $0x10] sm:$0xf]
        %v561 = vld [vmem:[%s252 + $0x14] sm:$0xf]
        %v562 = vld [vmem:[%s252 + $0x18] sm:$0xf]
        %v563 = vld [vmem:[%s252 + $0x1c] sm:$0xf]
        %v564 = vld [vmem:[%s252 + $0x20] sm:$0xf]
        %v565 = vld [vmem:[%s252 + $0x24] sm:$0xf]
        %v566 = vld [vmem:[%s252 + $0x28] sm:$0xf]
        %v567 = vld [vmem:[%s252 + $0x2c] sm:$0xf]
        %v568 = vld [vmem:[%s252 + $0x30] sm:$0xf]
        %v569 = vld [vmem:[%s252 + $0x34] sm:$0xf]
        %v570 = vld [vmem:[%s252 + $0x38] sm:$0xf]
        %v571 = vld [vmem:[%s252 + $0x3c] sm:$0xf]
        %v572 = vld [vmem:[%s282] sm:$0x1]
        %v574 = vlaneseq
        %v575 = vshrl.u32 %v574, 7
        %v576 = vsub.s32 0, %v575
        %v577 = vrot.slane %v572, %v576
        %v595 = vunpack.c.l.b16 %v556
        %v596 = vunpack.c.l.b16 %v557
        %v597 = vunpack.c.l.b16 %v558
        %v598 = vunpack.c.l.b16 %v559
        %v599 = vunpack.c.l.b16 %v560
        %v600 = vunpack.c.l.b16 %v561
        %v601 = vunpack.c.l.b16 %v562
        %v602 = vunpack.c.l.b16 %v563
        %v603 = vunpack.c.l.b16 %v564
        %v604 = vunpack.c.l.b16 %v565
        %v605 = vunpack.c.l.b16 %v566
        %v606 = vunpack.c.l.b16 %v567
        %v607 = vunpack.c.l.b16 %v568
        %v608 = vunpack.c.l.b16 %v569
        %v609 = vunpack.c.l.b16 %v570
        %v610 = vunpack.c.l.b16 %v571
        %v611 = vpack.c.b16 %v596, %v595
        %v612 = vpack.c.b16 %v598, %v597
        %v613 = vpack.c.b16 %v600, %v599
        %v614 = vpack.c.b16 %v602, %v601
        %v615 = vpack.c.b16 %v604, %v603
        %v616 = vpack.c.b16 %v606, %v605
        %v617 = vpack.c.b16 %v608, %v607
        %v618 = vpack.c.b16 %v610, %v609
        %627 = vmatprep.subr.bf16.mxu0 0
        %628 = vmatpush1.bf16.msra.mxu0 %v618
        %629 = vmatprep.subr.bf16.mxu0 0
        %630 = vmatpush1.bf16.msra.mxu0 %v617
        %631 = vmatprep.subr.bf16.mxu0 0
        %632 = vmatpush1.bf16.msra.mxu0 %v616
        %633 = vmatprep.subr.bf16.mxu0 0
        %634 = vmatpush1.bf16.msra.mxu0 %v615
        %635 = vmatprep.subr.bf16.mxu0 0
        %636 = vmatpush1.bf16.msra.mxu0 %v614
        %637 = vmatprep.subr.bf16.mxu0 0
        %638 = vmatpush1.bf16.msra.mxu0 %v613
        %639 = vmatprep.subr.bf16.mxu0 0
        %640 = vmatpush1.bf16.msra.mxu0 %v612
        %641 = vmatprep.subr.bf16.mxu0 0
        %642 = vmatpush1.bf16.msra.mxu0 %v611
        %643 = vmatprep.subr.bf16.mxu0 0
        %644 = vmatpush2.bf16.msra.mxu0 0
        %645 = vmatprep.subr.bf16.mxu0 0
        %646 = vmatpush2.bf16.msra.mxu0 0
        %647 = vmatprep.subr.bf16.mxu0 0
        %648 = vmatpush2.bf16.msra.mxu0 0
        %649 = vmatprep.subr.bf16.mxu0 0
        %650 = vmatpush2.bf16.msra.mxu0 0
        %651 = vmatprep.subr.bf16.mxu0 0
        %652 = vmatpush2.bf16.msra.mxu0 0
        %653 = vmatprep.subr.bf16.mxu0 0
        %654 = vmatpush2.bf16.msra.mxu0 0
        %655 = vmatprep.subr.bf16.mxu0 0
        %656 = vmatpush2.bf16.msra.mxu0 0
        %657 = vmatprep.subr.bf16.mxu0 0
        %658 = vmatpush2.bf16.msra.mxu0 0
        %659 = vmatprep.mubr.bf16.mxu0 0
        %660 = vmatmul.mubr.bf16.gmra.mxu0 %v548
        %v661 = vpop.f32.mrf.mxu0
        %v662 = vadd.f32 %v577, %v661
        %v663 = vpop.f32.mrf.mxu0
        %v664 = vpop.f32.mrf.mxu0
        %v665 = vadd.f32 %v577, %v664
        %v666 = vpop.f32.mrf.mxu0
        %667 = vmatprep.mubr.bf16.mxu0 0
        %668 = vmatmul.mubr.bf16.gmra.mxu0 %v549
        %v669 = vpop.f32.mrf.mxu0
        %v670 = vadd.f32 %v577, %v669
        %v671 = vpop.f32.mrf.mxu0
        %v672 = vpop.f32.mrf.mxu0
        %v673 = vadd.f32 %v577, %v672
        %v674 = vpop.f32.mrf.mxu0
        %675 = vmatprep.mubr.bf16.mxu0 0
        %676 = vmatmul.mubr.bf16.gmra.mxu0 %v550
        %v677 = vpop.f32.mrf.mxu0
        %v678 = vadd.f32 %v577, %v677
        %v679 = vpop.f32.mrf.mxu0
        %v680 = vpop.f32.mrf.mxu0
        %v681 = vadd.f32 %v577, %v680
        %v682 = vpop.f32.mrf.mxu0
        %683 = vmatprep.mubr.bf16.mxu0 0
        %684 = vmatmul.mubr.bf16.gmra.mxu0 %v551
        %v685 = vpop.f32.mrf.mxu0
        %v686 = vadd.f32 %v577, %v685
        %v687 = vpop.f32.mrf.mxu0
        %v688 = vpop.f32.mrf.mxu0
        %v689 = vadd.f32 %v577, %v688
        %v690 = vpop.f32.mrf.mxu0
        %691 = vmatprep.mubr.bf16.mxu0 0
        %692 = vmatmul.mubr.bf16.gmra.mxu0 %v552
        %v693 = vpop.f32.mrf.mxu0
        %v694 = vadd.f32 %v577, %v693
        %v695 = vpop.f32.mrf.mxu0
        %v696 = vpop.f32.mrf.mxu0
        %v697 = vadd.f32 %v577, %v696
        %v698 = vpop.f32.mrf.mxu0
        %699 = vmatprep.mubr.bf16.mxu0 0
        %700 = vmatmul.mubr.bf16.gmra.mxu0 %v553
        %v701 = vpop.f32.mrf.mxu0
        %v702 = vadd.f32 %v577, %v701
        %v703 = vpop.f32.mrf.mxu0
        %v704 = vpop.f32.mrf.mxu0
        %v705 = vadd.f32 %v577, %v704
        %v706 = vpop.f32.mrf.mxu0
        %707 = vmatprep.mubr.bf16.mxu0 0
        %708 = vmatmul.mubr.bf16.gmra.mxu0 %v554
        %v709 = vpop.f32.mrf.mxu0
        %v710 = vadd.f32 %v577, %v709
        %v711 = vpop.f32.mrf.mxu0
        %v712 = vpop.f32.mrf.mxu0
        %v713 = vadd.f32 %v577, %v712
        %v714 = vpop.f32.mrf.mxu0
        %715 = vmatprep.mubr.bf16.mxu0 0
        %716 = vmatmul.mubr.bf16.gmra.mxu0 %v555
        %v717 = vpop.f32.mrf.mxu0
        %v718 = vadd.f32 %v577, %v717
        %v719 = vpop.f32.mrf.mxu0
        %v720 = vpop.f32.mrf.mxu0
        %v721 = vadd.f32 %v577, %v720
        %v722 = vpop.f32.mrf.mxu0
        %723 = vdwg.mxu0
        %vm724 = vcmp.gt.f32.partialorder %v662, 0.0
        %vm725 = vcmp.gt.f32.partialorder %v665, 0.0
        %vm726 = vcmp.gt.f32.partialorder %v670, 0.0
        %vm727 = vcmp.gt.f32.partialorder %v673, 0.0
        %vm728 = vcmp.gt.f32.partialorder %v678, 0.0
        %vm729 = vcmp.gt.f32.partialorder %v681, 0.0
        %vm730 = vcmp.gt.f32.partialorder %v686, 0.0
        %vm731 = vcmp.gt.f32.partialorder %v689, 0.0
        %vm732 = vcmp.gt.f32.partialorder %v694, 0.0
        %vm733 = vcmp.gt.f32.partialorder %v697, 0.0
        %vm734 = vcmp.gt.f32.partialorder %v702, 0.0
        %vm735 = vcmp.gt.f32.partialorder %v705, 0.0
        %vm736 = vcmp.gt.f32.partialorder %v710, 0.0
        %vm737 = vcmp.gt.f32.partialorder %v713, 0.0
        %vm738 = vcmp.gt.f32.partialorder %v718, 0.0
        %vm739 = vcmp.gt.f32.partialorder %v721, 0.0
        %v740 = vld [vmem:[%s285] sm:$0x1]
        %v742 = vlaneseq
        %v743 = vshrl.u32 %v742, 7
        %v744 = vsub.s32 0, %v743
        %v745 = vrot.slane %v740, %v744
        %v747 = vmul.f32 %v745, %v662
        %v748 = vmul.f32 %v745, %v665
        %v749 = vmul.f32 %v745, %v670
        %v750 = vmul.f32 %v745, %v673
        %v751 = vmul.f32 %v745, %v678
        %v752 = vmul.f32 %v745, %v681
        %v753 = vmul.f32 %v745, %v686
        %v754 = vmul.f32 %v745, %v689
        %v755 = vmul.f32 %v745, %v694
        %v756 = vmul.f32 %v745, %v697
        %v757 = vmul.f32 %v745, %v702
        %v758 = vmul.f32 %v745, %v705
        %v759 = vmul.f32 %v745, %v710
        %v760 = vmul.f32 %v745, %v713
        %v761 = vmul.f32 %v745, %v718
        %v762 = vmul.f32 %v745, %v721
        %v763 = vsel %vm724, %v662, %v747
        %v764 = vsel %vm725, %v665, %v748
        %v765 = vsel %vm726, %v670, %v749
        %v766 = vsel %vm727, %v673, %v750
        %v767 = vsel %vm728, %v678, %v751
        %v768 = vsel %vm729, %v681, %v752
        %v769 = vsel %vm730, %v686, %v753
        %v770 = vsel %vm731, %v689, %v754
        %v771 = vsel %vm732, %v694, %v755
        %v772 = vsel %vm733, %v697, %v756
        %v773 = vsel %vm734, %v702, %v757
        %v774 = vsel %vm735, %v705, %v758
        %v775 = vsel %vm736, %v710, %v759
        %v776 = vsel %vm737, %v713, %v760
        %v777 = vsel %vm738, %v718, %v761
        %v778 = vsel %vm739, %v721, %v762
        %v779 = vpack.c.bf16 %v764, %v763
        %v780 = vpack.c.bf16 %v766, %v765
        %v781 = vpack.c.bf16 %v768, %v767
        %v782 = vpack.c.bf16 %v770, %v769
        %v783 = vpack.c.bf16 %v772, %v771
        %v784 = vpack.c.bf16 %v774, %v773
        %v785 = vpack.c.bf16 %v776, %v775
        %v786 = vpack.c.bf16 %v778, %v777
        %v795 = vunpack.c.l.b16 %v779
        %v796 = vunpack.c.h.b16 %v779
        %v797 = vunpack.c.l.b16 %v780
        %v798 = vunpack.c.h.b16 %v780
        %v799 = vunpack.c.l.b16 %v781
        %v800 = vunpack.c.h.b16 %v781
        %v801 = vunpack.c.l.b16 %v782
        %v802 = vunpack.c.h.b16 %v782
        %v803 = vunpack.c.l.b16 %v783
        %v804 = vunpack.c.h.b16 %v783
        %v805 = vunpack.c.l.b16 %v784
        %v806 = vunpack.c.h.b16 %v784
        %v807 = vunpack.c.l.b16 %v785
        %v808 = vunpack.c.h.b16 %v785
        %v809 = vunpack.c.l.b16 %v786
        %v810 = vunpack.c.h.b16 %v786
        %v811 = vpack.c.b16 %v795, %v795
        %v812 = vpack.c.b16 %v796, %v796
        %v813 = vpack.c.b16 %v797, %v797
        %v814 = vpack.c.b16 %v798, %v798
        %v815 = vpack.c.b16 %v799, %v799
        %v816 = vpack.c.b16 %v800, %v800
        %v817 = vpack.c.b16 %v801, %v801
        %v818 = vpack.c.b16 %v802, %v802
        %v819 = vpack.c.b16 %v803, %v803
        %v820 = vpack.c.b16 %v804, %v804
        %v821 = vpack.c.b16 %v805, %v805
        %v822 = vpack.c.b16 %v806, %v806
        %v823 = vpack.c.b16 %v807, %v807
        %v824 = vpack.c.b16 %v808, %v808
        %v825 = vpack.c.b16 %v809, %v809
        %v826 = vpack.c.b16 %v810, %v810
        %843 = vst [vmem:[#allocation2] sm:$0xf] %v811
        %844 = vst [vmem:[#allocation2 + $0x4] sm:$0xf] %v812
        %845 = vst [vmem:[#allocation2 + $0x8] sm:$0xf] %v813
        %846 = vst [vmem:[#allocation2 + $0xc] sm:$0xf] %v814
        %847 = vst [vmem:[#allocation2 + $0x10] sm:$0xf] %v815
        %848 = vst [vmem:[#allocation2 + $0x14] sm:$0xf] %v816
        %849 = vst [vmem:[#allocation2 + $0x18] sm:$0xf] %v817
        %850 = vst [vmem:[#allocation2 + $0x1c] sm:$0xf] %v818
        %851 = vst [vmem:[#allocation2 + $0x20] sm:$0xf] %v819
        %852 = vst [vmem:[#allocation2 + $0x24] sm:$0xf] %v820
        %853 = vst [vmem:[#allocation2 + $0x28] sm:$0xf] %v821
        %854 = vst [vmem:[#allocation2 + $0x2c] sm:$0xf] %v822
        %855 = vst [vmem:[#allocation2 + $0x30] sm:$0xf] %v823
        %856 = vst [vmem:[#allocation2 + $0x34] sm:$0xf] %v824
        %857 = vst [vmem:[#allocation2 + $0x38] sm:$0xf] %v825
        %858 = vst [vmem:[#allocation2 + $0x3c] sm:$0xf] %v826
        %p859 = scmp.eq.s32.totalorder %s19, 1
        // Predicated region
        $region57: #{tpu_custom_call.1} parent=39 // pred_check
          %p860 = pneg %p859
        $region58: #{tpu_custom_call.1} parent=39 // pred_check_branch
          %862 = sbr.rel (%p860) target = $region60
        $region59: #{tpu_custom_call.1} parent=39 // pred_region
          %863 = vst [vmem:[#allocation9] sm:$0xff] %v763
          %864 = vst [vmem:[#allocation9 + $0x8] sm:$0xff] %v764
          %865 = vst [vmem:[#allocation9 + $0x10] sm:$0xff] %v765
          %866 = vst [vmem:[#allocation9 + $0x18] sm:$0xff] %v766
          %867 = vst [vmem:[#allocation9 + $0x20] sm:$0xff] %v767
          %868 = vst [vmem:[#allocation9 + $0x28] sm:$0xff] %v768
          %869 = vst [vmem:[#allocation9 + $0x30] sm:$0xff] %v769
          %870 = vst [vmem:[#allocation9 + $0x38] sm:$0xff] %v770
          %871 = vst [vmem:[#allocation9 + $0x40] sm:$0xff] %v771
          %872 = vst [vmem:[#allocation9 + $0x48] sm:$0xff] %v772
          %873 = vst [vmem:[#allocation9 + $0x50] sm:$0xff] %v773
          %874 = vst [vmem:[#allocation9 + $0x58] sm:$0xff] %v774
          %875 = vst [vmem:[#allocation9 + $0x60] sm:$0xff] %v775
          %876 = vst [vmem:[#allocation9 + $0x68] sm:$0xff] %v776
          %877 = vst [vmem:[#allocation9 + $0x70] sm:$0xff] %v777
          %878 = vst [vmem:[#allocation9 + $0x78] sm:$0xff] %v778
        $region60: #{tpu_custom_call.1} parent=39 // pred_fallthru
          _
        // Predicated region
        $region61: #{tpu_custom_call.1} parent=39 // pred_check
          %p879 = pneg %p152
        $region62: #{tpu_custom_call.1} parent=39 // pred_check_branch
          %881 = sbr.rel (%p879) target = $region64
        $region63: #{tpu_custom_call.1} parent=39 // pred_region
          %s883 = ssub.s32 2048, 2048
          %884 = vsyncadd [#allocation5], %s883
          %s885 = sshll.u32 [#allocation9], 4
          %s886 = int_to_ptr.vmem [resolvable:$true] %s885
          %891 = dma.vmem_to_hbm [thread:$0]  %s886, 2048, %s5, [#allocation5], 128, 128, 8
        $region64: #{tpu_custom_call.1} parent=39 // pred_fallthru
          _
        // Predicated region
        $region65: #{tpu_custom_call.1} parent=39 // pred_check
          %p892 = pneg %p152
        $region66: #{tpu_custom_call.1} parent=39 // pred_check_branch
          %894 = sbr.rel (%p892) target = $region68
        $region67: #{tpu_custom_call.1} parent=39 // pred_region
          %895 = dma.done [#allocation5], 2048
        $region68: #{tpu_custom_call.1} parent=39 // pred_fallthru
          _
      $region40: #{tpu_custom_call.1} parent=5 // pred_fallthru
        _
      %p896 = scmp.le.s32.totalorder 2, %s14
      // Predicated region
      $region69: #{tpu_custom_call.1} parent=5 // pred_check
        %p897 = pneg %p896
      $region70: #{tpu_custom_call.1} parent=5 // pred_check_branch
        %899 = sbr.rel (%p897) target = $region72
      $region71: #{tpu_custom_call.1} parent=5 // pred_region
        %s900 = ssub.s32 %s14, 2
      $region72: #{tpu_custom_call.1} parent=5 // pred_fallthru
        _
    $region6: #{tpu_custom_call.1} parent=1 // loop_footer
      %s18 = sadd.s32 1, %s14
    $region7: #{tpu_custom_call.1} parent=1 // loop_footer_branch
      %13 = sbr.rel target = $region3
    $region8: #{tpu_custom_call.1} parent=1 // loop_exit
      _
    %901 = vsyncpa [#allocation4], 1
    %s902 = scalar_lea.sflag [#allocation4], 1
    %903 = vsyncpa %s902, 1
    %904 = vsyncpa [#allocation7], 1
    %905 = vsyncpa [#allocation5], 1
    %s906 = scalar_lea.sflag [#allocation5], 1
    %907 = vsyncpa %s906, 1

</llo_original>
